<compile_context>
chip_gen: v7x
topology: tpu7x:2x2x1
jax: 0.10.0
libtpu: 0.0.40
codegen_flags: <defaults>
</compile_context>

<pallas_src>
import functools

import jax
import jax.numpy as jnp
from jax.experimental import pallas as pl
from jax.experimental.pallas import tpu as pltpu

H = W = 16          # input spatial size
HO = WO = 8         # conv1 output spatial size (k=3, s=2, p=1)
HW = H * W          # 256  (lane dimension)
HOWO = HO * WO      # 64
EPS = 1e-5


# ---------------------------------------------------------------------------
# Kernel
# ---------------------------------------------------------------------------
def soft_attn_kernel(scal_ref, x_ref, w1_ref, up_ref, wc1_ref, bc1_ref,
                     wc2_ref, bc2_ref, wft_ref, o_ref, *, num_channels):
    x = x_ref[...]                                            # (BB, C, HW) f32

    # ---- Spatial attention -------------------------------------------------
    m = jnp.mean(x, axis=1)                                   # channel mean, (BB, HW)
    # conv1(3x3,s2,p1) + BN1 + ReLU folded into one (HW, HOWO) matmul + scalar
    y1 = jnp.maximum(
        jnp.dot(m, w1_ref[...], preferred_element_type=jnp.float32)
        + scal_ref[0], 0.0)                                   # (BB, HOWO)
    # bilinear x2 upsample (align_corners) + 1x1 conv2 + BN2 + ReLU folded
    # into one (HOWO, HW) matmul + scalar
    y_sp = jnp.maximum(
        jnp.dot(y1, up_ref[...], preferred_element_type=jnp.float32)
        + scal_ref[1], 0.0)                                   # (BB, HW)

    # ---- Channel attention ---------------------------------------------------
    p = jnp.mean(x, axis=2)                                   # global avg pool, (BB, C)
    z1 = jnp.maximum(
        jnp.dot(p, wc1_ref[...], preferred_element_type=jnp.float32)
        + bc1_ref[...], 0.0)                                  # (BB, CRP)
    y_ch = jnp.maximum(
        jnp.dot(z1, wc2_ref[...], preferred_element_type=jnp.float32)
        + bc2_ref[...], 0.0)                                  # (BB, C)

    # ---- Combine + final 1x1 conv + BN + ReLU + sigmoid ----------------------
    # (y_spatial * y_channel) followed by a 1x1 conv factorizes into a
    # per-(batch, out-channel) scale of y_spatial:
    #   out[b,c,l] = sigmoid(relu(y_sp[b,l] * w_eff[b,c] + bias[c]))
    w_eff = jnp.dot(y_ch, wft_ref[...],
                    preferred_element_type=jnp.float32)       # (BB, C)
    for c in range(num_channels):
        pre = y_sp * w_eff[:, c:c + 1] + scal_ref[2 + c]      # (BB, HW), lane-dense
        o_ref[:, c, :] = jax.nn.sigmoid(jnp.maximum(pre, 0.0))


# ---------------------------------------------------------------------------
# Host-side constant construction (glue)
# ---------------------------------------------------------------------------
def _bilinear_matrix(n_in, n_out):
    """Row-interpolation matrix for bilinear upsampling, align_corners=True."""
    i = jnp.arange(n_out, dtype=jnp.float32)
    s = i * (n_in - 1) / (n_out - 1)
    f = jnp.floor(s)
    t = s - f
    f = f.astype(jnp.int32)
    f0 = jnp.clip(f, 0, n_in - 1)
    f1 = jnp.clip(f + 1, 0, n_in - 1)
    return (jax.nn.one_hot(f0, n_in, dtype=jnp.float32) * (1.0 - t)[:, None]
            + jax.nn.one_hot(f1, n_in, dtype=jnp.float32) * t[:, None])   # (n_out, n_in)


def _down_shift_matrix(d, n_in, n_out):
    """One-hot matrix selecting padded-input row 2*i + d - 1 (zero if OOB)."""
    idx = 2 * jnp.arange(n_out) + d - 1
    valid = ((idx >= 0) & (idx < n_in)).astype(jnp.float32)
    return jax.nn.one_hot(jnp.clip(idx, 0, n_in - 1), n_in,
                          dtype=jnp.float32) * valid[:, None]             # (n_out, n_in)


def soft_attn(x, spatial, channel, final, *, block_b=32):
    """x: (N, C, H, W) f32.  Returns sigmoid attention maps of shape (N, C, H, W)."""
    w1, b1, bn1, w2, b2, bn2 = spatial
    wc1, bc1v, bnc1, wc2, bc2v, bnc2 = channel
    wf, bfv, bnf = final

    N, C, Hx, Wx = x.shape
    assert (Hx, Wx) == (H, W)
    Cr = wc1.shape[0]
    f32 = jnp.float32

    # ---- fold inference-mode BN into scales/shifts ----
    def bn_scale(bn):
        g, beta, mu, var = bn
        s = g / jnp.sqrt(var + EPS)
        return s, beta - s * mu

    s1, sh1 = bn_scale(bn1)          # (1,)
    s2, sh2 = bn_scale(bn2)          # (1,)
    sc1, shc1 = bn_scale(bnc1)       # (Cr,)
    sc2, shc2 = bn_scale(bnc2)       # (C,)
    sf, shf = bn_scale(bnf)          # (C,)

    # spatial conv1 (3x3, s2, p1) on the channel mean -> single (HW, HOWO) matrix
    L = jnp.stack([_down_shift_matrix(d, H, HO) for d in range(3)])     # (3, HO, H)
    R = jnp.stack([_down_shift_matrix(d, W, WO).T for d in range(3)])   # (3, W, WO)
    W1 = jnp.einsum('de,dah,ewb->hwab', w1.reshape(3, 3).astype(f32), L, R)
    W1f = (W1.reshape(HW, HOWO) * s1[0]).astype(f32)                    # BN1 scale folded
    t1 = (s1[0] * b1[0] + sh1[0]).astype(f32)                           # scalar bias

    # bilinear x2 upsample (align_corners) + 1x1 conv2 + BN2 -> single (HOWO, HW) matrix
    U = _bilinear_matrix(HO, H)                                         # (H, HO)
    UkronT = jnp.kron(U, U).T                                           # (HOWO, HW)
    UPf = (UkronT * (w2.reshape(()) * s2[0])).astype(f32)
    t2 = (s2[0] * b2[0] + sh2[0]).astype(f32)                           # scalar bias

    # channel-attention MLP, hidden dim zero-padded to a multiple of 128 lanes
    crp = ((Cr + 127) // 128) * 128
    Wc1f = wc1.reshape(Cr, C).astype(f32).T * sc1[None, :]              # (C, Cr)
    bc1f = (sc1 * bc1v + shc1).astype(f32)                              # (Cr,)
    Wc1p = jnp.zeros((C, crp), f32).at[:, :Cr].set(Wc1f)
    bc1p = jnp.zeros((1, crp), f32).at[0, :Cr].set(bc1f)
    Wc2f = wc2.reshape(C, Cr).astype(f32).T * sc2[None, :]              # (Cr, C)
    bc2b = (sc2 * bc2v + shc2).astype(f32).reshape(1, C)
    Wc2p = jnp.zeros((crp, C), f32).at[:Cr, :].set(Wc2f)

    # final 1x1 conv + BN folded: w_eff = y_channel @ WfT, per-channel bias bff
    WfT = (wf.reshape(C, C).astype(f32).T * sf[None, :]).astype(f32)    # (C, C)
    bff = (sf * bfv + shf).astype(f32)                                  # (C,)

    scal = jnp.concatenate([jnp.stack([t1, t2]), bff]).astype(f32)      # (2 + C,) SMEM

    # ---- batch blocking & lane-dense layout ----
    bytes_per_image = C * HW * 4
    bb_vmem = max(1, (24 * 1024 * 1024) // (4 * bytes_per_image))  # in+out double-buffered
    BB = max(1, min(block_b, bb_vmem, N))
    n_blocks = -(-N // BB)
    Npad = n_blocks * BB
    xr = x.astype(f32).reshape(N, C, HW)
    if Npad != N:
        xr = jnp.concatenate([xr, jnp.zeros((Npad - N, C, HW), f32)], axis=0)

    kernel = functools.partial(soft_attn_kernel, num_channels=C)
    out = pl.pallas_call(
        kernel,
        out_shape=jax.ShapeDtypeStruct((Npad, C, HW), f32),
        grid=(n_blocks,),
        in_specs=[
            pl.BlockSpec(memory_space=pltpu.MemorySpace.SMEM),      # folded scalars (2+C,)
            pl.BlockSpec((BB, C, HW), lambda n: (n, 0, 0)),         # x (batch block)
            pl.BlockSpec((HW, HOWO), lambda n: (0, 0)),             # spatial conv1 matrix
            pl.BlockSpec((HOWO, HW), lambda n: (0, 0)),             # upsample+conv2 matrix
            pl.BlockSpec((C, crp), lambda n: (0, 0)),               # channel conv1 (padded)
            pl.BlockSpec((1, crp), lambda n: (0, 0)),               # channel bias1 (padded)
            pl.BlockSpec((crp, C), lambda n: (0, 0)),               # channel conv2 (padded)
            pl.BlockSpec((1, C), lambda n: (0, 0)),                 # channel bias2
            pl.BlockSpec((C, C), lambda n: (0, 0)),                 # final conv weight^T
        ],
        out_specs=pl.BlockSpec((BB, C, HW), lambda n: (n, 0, 0)),
        compiler_params=pltpu.CompilerParams(
            dimension_semantics=("parallel",)),
    )(scal, xr, W1f, UPf, Wc1p, bc1p, Wc2p, bc2b, WfT)

    return out[:N].reshape(N, C, H, W)


# ---------------------------------------------------------------------------
# Pure-JAX reference (inference-mode BatchNorm)
# ---------------------------------------------------------------------------
def _convblock_ref(y, w, b, bn, stride=1, pad=0):
    g, beta, mu, var = [t.reshape(1, -1, 1, 1) for t in bn]
    y = jax.lax.conv_general_dilated(y, w, (stride, stride), ((pad, pad), (pad, pad)),
                                     dimension_numbers=('NCHW', 'OIHW', 'NCHW'))
    y = y + b.reshape(1, -1, 1, 1)
    y = (y - mu) / jnp.sqrt(var + EPS) * g + beta
    return jnp.maximum(y, 0.0)


def reference(x, spatial, channel, final):
    w1, b1, bn1, w2, b2, bn2 = spatial
    wc1, bc1v, bnc1, wc2, bc2v, bnc2 = channel
    wf, bfv, bnf = final
    # SpatialAttn
    m = x.mean(axis=1, keepdims=True)
    ys = _convblock_ref(m, w1, b1, bn1, stride=2, pad=1)
    U = _bilinear_matrix(HO, H)
    ys = jnp.einsum('ip,ncpq,jq->ncij', U, ys, U)
    ys = _convblock_ref(ys, w2, b2, bn2)
    # ChannelAttn
    p = x.mean(axis=(2, 3), keepdims=True)
    yc = _convblock_ref(p, wc1, bc1v, bnc1)
    yc = _convblock_ref(yc, wc2, bc2v, bnc2)
    # SoftAttn combine
    y = ys * yc
    y = _convblock_ref(y, wf, bfv, bnf)
    return jax.nn.sigmoid(y)


if __name__ == "__main__":
    key = jax.random.PRNGKey(0)
    ks = jax.random.split(key, 16)
    N, C, RED = 2, 16, 16          # SoftAttn requires in_channels % reduction_rate == 0
    Cr = C // RED

    x = jax.random.normal(ks[0], (N, C, H, W), jnp.float32)

    def rand_bn(k, n):
        k1, k2, k3, k4 = jax.random.split(k, 4)
        return (1.0 + 0.1 * jax.random.normal(k1, (n,), jnp.float32),            # gamma
                0.1 * jax.random.normal(k2, (n,), jnp.float32),                  # beta
                0.05 * jax.random.normal(k3, (n,), jnp.float32),                 # running mean
                jnp.abs(1.0 + 0.1 * jax.random.normal(k4, (n,), jnp.float32)))   # running var

    # SpatialAttn parameters
    w1 = 0.3 * jax.random.normal(ks[1], (1, 1, 3, 3), jnp.float32)
    b1 = 0.1 * jax.random.normal(ks[2], (1,), jnp.float32)
    bn1 = rand_bn(ks[3], 1)
    w2 = 0.5 * jax.random.normal(ks[4], (1, 1, 1, 1), jnp.float32)
    b2 = 0.1 * jax.random.normal(ks[5], (1,), jnp.float32)
    bn2 = rand_bn(ks[6], 1)
    spatial = (w1, b1, bn1, w2, b2, bn2)

    # ChannelAttn parameters
    wc1 = 0.3 * jax.random.normal(ks[7], (Cr, C, 1, 1), jnp.float32)
    bc1v = 0.1 * jax.random.normal(ks[8], (Cr,), jnp.float32)
    bnc1 = rand_bn(ks[9], Cr)
    wc2 = 0.3 * jax.random.normal(ks[10], (C, Cr, 1, 1), jnp.float32)
    bc2v = 0.1 * jax.random.normal(ks[11], (C,), jnp.float32)
    bnc2 = rand_bn(ks[12], C)
    channel = (wc1, bc1v, bnc1, wc2, bc2v, bnc2)

    # Final ConvBlock parameters
    wf = 0.3 * jax.random.normal(ks[13], (C, C, 1, 1), jnp.float32)
    bfv = 0.1 * jax.random.normal(ks[14], (C,), jnp.float32)
    bnf = rand_bn(ks[15], C)
    final = (wf, bfv, bnf)

    out = soft_attn(x, spatial, channel, final)
    out = jax.block_until_ready(out)

    ref = reference(x, spatial, channel, final)
    assert out.shape == (N, C, H, W), out.shape
    err = float(jnp.max(jnp.abs(out - ref)))
    assert jnp.allclose(out, ref, atol=2e-2, rtol=2e-2), err

    print("KERNEL_OK")
</pallas_src>

<mosaic_0001>
module attributes {stable_mosaic.version = 11 : i64} {
  func.func @soft_attn_kernel(%arg0: i32, %arg1: memref<18xf32, #tpu.memory_space<smem>>, %arg2: memref<2x16x256xf32, #tpu.memory_space<vmem>>, %arg3: memref<256x64xf32, #tpu.memory_space<vmem>>, %arg4: memref<64x256xf32, #tpu.memory_space<vmem>>, %arg5: memref<16x128xf32, #tpu.memory_space<vmem>>, %arg6: memref<1x128xf32, #tpu.memory_space<vmem>>, %arg7: memref<128x16xf32, #tpu.memory_space<vmem>>, %arg8: memref<1x16xf32, #tpu.memory_space<vmem>>, %arg9: memref<16x16xf32, #tpu.memory_space<vmem>>, %arg10: memref<2x16x256xf32, #tpu.memory_space<vmem>>) attributes {dimension_semantics = [#tpu.dimension_semantics<parallel>], iteration_bounds = array<i64: 1>, scalar_prefetch = 0 : i64, scratch_operands = 0 : i64, tpu.core_type = #tpu.core_type<tc>, window_params = [{transform_indices = @transform_0, window_bounds = array<i64: 18>}, {transform_indices = @transform_1, window_bounds = array<i64: 2, 16, 256>}, {pipeline_mode = #tpu.pipeline_mode<synchronous>, transform_indices = @transform_2, window_bounds = array<i64: 256, 64>}, {pipeline_mode = #tpu.pipeline_mode<synchronous>, transform_indices = @transform_3, window_bounds = array<i64: 64, 256>}, {pipeline_mode = #tpu.pipeline_mode<synchronous>, transform_indices = @transform_4, window_bounds = array<i64: 16, 128>}, {pipeline_mode = #tpu.pipeline_mode<synchronous>, transform_indices = @transform_5, window_bounds = array<i64: 1, 128>}, {pipeline_mode = #tpu.pipeline_mode<synchronous>, transform_indices = @transform_6, window_bounds = array<i64: 128, 16>}, {pipeline_mode = #tpu.pipeline_mode<synchronous>, transform_indices = @transform_7, window_bounds = array<i64: 1, 16>}, {pipeline_mode = #tpu.pipeline_mode<synchronous>, transform_indices = @transform_8, window_bounds = array<i64: 16, 16>}, {transform_indices = @transform_9, window_bounds = array<i64: 2, 16, 256>}]} {
    %c0 = arith.constant 0 : index
    %c0_0 = arith.constant 0 : index
    %c0_1 = arith.constant 0 : index
    %0 = vector.load %arg2[%c0, %c0_0, %c0_1] : memref<2x16x256xf32, #tpu.memory_space<vmem>>, vector<2x16x256xf32>
    %cst = arith.constant dense<0.000000e+00> : vector<2x256xf32>
    %1 = vector.multi_reduction <add>, %0, %cst [1] : vector<2x16x256xf32> to vector<2x256xf32>
    %cst_2 = arith.constant 1.600000e+01 : f32
    %2 = vector.broadcast %cst_2 : f32 to vector<2x256xf32>
    %3 = arith.divf %1, %2 : vector<2x256xf32>
    %c0_3 = arith.constant 0 : index
    %c0_4 = arith.constant 0 : index
    %4 = vector.load %arg3[%c0_3, %c0_4] : memref<256x64xf32, #tpu.memory_space<vmem>>, vector<256x64xf32>
    %cst_5 = arith.constant dense<0.000000e+00> : vector<2x64xf32>
    %5 = tpu.matmul %3, %4, %cst_5 {dimension_numbers = #tpu.dot_dimension_numbers<[1], [0], [0], [1], [0, 0, 1, 1], [], []>} : vector<2x256xf32>, vector<256x64xf32>, vector<2x64xf32> -> vector<2x64xf32>
    %c0_6 = arith.constant 0 : index
    %6 = memref.load %arg1[%c0_6] : memref<18xf32, #tpu.memory_space<smem>>
    %7 = vector.broadcast %6 : f32 to vector<2x64xf32>
    %8 = arith.addf %5, %7 : vector<2x64xf32>
    %cst_7 = arith.constant 0.000000e+00 : f32
    %9 = vector.broadcast %cst_7 : f32 to vector<2x64xf32>
    %10 = arith.maximumf %8, %9 : vector<2x64xf32>
    %c0_8 = arith.constant 0 : index
    %c0_9 = arith.constant 0 : index
    %11 = vector.load %arg4[%c0_8, %c0_9] : memref<64x256xf32, #tpu.memory_space<vmem>>, vector<64x256xf32>
    %cst_10 = arith.constant dense<0.000000e+00> : vector<2x256xf32>
    %12 = tpu.matmul %10, %11, %cst_10 {dimension_numbers = #tpu.dot_dimension_numbers<[1], [0], [0], [1], [0, 0, 1, 1], [], []>} : vector<2x64xf32>, vector<64x256xf32>, vector<2x256xf32> -> vector<2x256xf32>
    %c1 = arith.constant 1 : index
    %13 = memref.load %arg1[%c1] : memref<18xf32, #tpu.memory_space<smem>>
    %14 = vector.broadcast %13 : f32 to vector<2x256xf32>
    %15 = arith.addf %12, %14 : vector<2x256xf32>
    %cst_11 = arith.constant 0.000000e+00 : f32
    %16 = vector.broadcast %cst_11 : f32 to vector<2x256xf32>
    %17 = arith.maximumf %15, %16 : vector<2x256xf32>
    %cst_12 = arith.constant dense<0.000000e+00> : vector<2x16xf32>
    %18 = vector.multi_reduction <add>, %0, %cst_12 [2] : vector<2x16x256xf32> to vector<2x16xf32>
    %cst_13 = arith.constant 2.560000e+02 : f32
    %19 = vector.broadcast %cst_13 : f32 to vector<2x16xf32>
    %20 = arith.divf %18, %19 : vector<2x16xf32>
    %c0_14 = arith.constant 0 : index
    %c0_15 = arith.constant 0 : index
    %21 = vector.load %arg5[%c0_14, %c0_15] : memref<16x128xf32, #tpu.memory_space<vmem>>, vector<16x128xf32>
    %cst_16 = arith.constant dense<0.000000e+00> : vector<2x128xf32>
    %22 = tpu.matmul %20, %21, %cst_16 {dimension_numbers = #tpu.dot_dimension_numbers<[1], [0], [0], [1], [0, 0, 1, 1], [], []>} : vector<2x16xf32>, vector<16x128xf32>, vector<2x128xf32> -> vector<2x128xf32>
    %c0_17 = arith.constant 0 : index
    %c0_18 = arith.constant 0 : index
    %23 = vector.load %arg6[%c0_17, %c0_18] : memref<1x128xf32, #tpu.memory_space<vmem>>, vector<1x128xf32>
    %24 = vector.broadcast %23 : vector<1x128xf32> to vector<2x128xf32>
    %25 = arith.addf %22, %24 : vector<2x128xf32>
    %cst_19 = arith.constant 0.000000e+00 : f32
    %26 = vector.broadcast %cst_19 : f32 to vector<2x128xf32>
    %27 = arith.maximumf %25, %26 : vector<2x128xf32>
    %c0_20 = arith.constant 0 : index
    %c0_21 = arith.constant 0 : index
    %28 = vector.load %arg7[%c0_20, %c0_21] : memref<128x16xf32, #tpu.memory_space<vmem>>, vector<128x16xf32>
    %cst_22 = arith.constant dense<0.000000e+00> : vector<2x16xf32>
    %29 = tpu.matmul %27, %28, %cst_22 {dimension_numbers = #tpu.dot_dimension_numbers<[1], [0], [0], [1], [0, 0, 1, 1], [], []>} : vector<2x128xf32>, vector<128x16xf32>, vector<2x16xf32> -> vector<2x16xf32>
    %c0_23 = arith.constant 0 : index
    %c0_24 = arith.constant 0 : index
    %30 = vector.load %arg8[%c0_23, %c0_24] : memref<1x16xf32, #tpu.memory_space<vmem>>, vector<1x16xf32>
    %31 = vector.broadcast %30 : vector<1x16xf32> to vector<2x16xf32>
    %32 = arith.addf %29, %31 : vector<2x16xf32>
    %cst_25 = arith.constant 0.000000e+00 : f32
    %33 = vector.broadcast %cst_25 : f32 to vector<2x16xf32>
    %34 = arith.maximumf %32, %33 : vector<2x16xf32>
    %c0_26 = arith.constant 0 : index
    %c0_27 = arith.constant 0 : index
    %35 = vector.load %arg9[%c0_26, %c0_27] : memref<16x16xf32, #tpu.memory_space<vmem>>, vector<16x16xf32>
    %cst_28 = arith.constant dense<0.000000e+00> : vector<2x16xf32>
    %36 = tpu.matmul %34, %35, %cst_28 {dimension_numbers = #tpu.dot_dimension_numbers<[1], [0], [0], [1], [0, 0, 1, 1], [], []>} : vector<2x16xf32>, vector<16x16xf32>, vector<2x16xf32> -> vector<2x16xf32>
    %37 = vector.extract_strided_slice %36 {offsets = [0, 0], sizes = [2, 1], strides = [1, 1]} : vector<2x16xf32> to vector<2x1xf32>
    %38 = vector.broadcast %37 : vector<2x1xf32> to vector<2x256xf32>
    %39 = arith.mulf %17, %38 : vector<2x256xf32>
    %c2 = arith.constant 2 : index
    %40 = memref.load %arg1[%c2] : memref<18xf32, #tpu.memory_space<smem>>
    %41 = vector.broadcast %40 : f32 to vector<2x256xf32>
    %42 = arith.addf %39, %41 : vector<2x256xf32>
    %cst_29 = arith.constant 0.000000e+00 : f32
    %43 = vector.broadcast %cst_29 : f32 to vector<2x256xf32>
    %44 = arith.maximumf %42, %43 : vector<2x256xf32>
    %45 = arith.negf %44 : vector<2x256xf32>
    %46 = math.exp %45 : vector<2x256xf32>
    %cst_30 = arith.constant 1.000000e+00 : f32
    %47 = vector.broadcast %cst_30 : f32 to vector<2x256xf32>
    %48 = arith.addf %47, %46 : vector<2x256xf32>
    %49 = arith.divf %47, %48 : vector<2x256xf32>
    %c0_31 = arith.constant 0 : index
    %c0_32 = arith.constant 0 : index
    %c0_33 = arith.constant 0 : index
    %50 = vector.load %arg10[%c0_31, %c0_32, %c0_33] : memref<2x16x256xf32, #tpu.memory_space<vmem>>, vector<2x1x256xf32>
    %51 = vector.shape_cast %50 : vector<2x1x256xf32> to vector<2x256xf32>
    %52 = vector.shape_cast %49 : vector<2x256xf32> to vector<2x1x256xf32>
    tpu.vector_store %arg10[%c0_31, %c0_32, %c0_33], %52 {strides = array<i32>} : memref<2x16x256xf32, #tpu.memory_space<vmem>>, vector<2x1x256xf32>,
    %53 = vector.extract_strided_slice %36 {offsets = [0, 1], sizes = [2, 1], strides = [1, 1]} : vector<2x16xf32> to vector<2x1xf32>
    %54 = vector.broadcast %53 : vector<2x1xf32> to vector<2x256xf32>
    %55 = arith.mulf %17, %54 : vector<2x256xf32>
    %c3 = arith.constant 3 : index
    %56 = memref.load %arg1[%c3] : memref<18xf32, #tpu.memory_space<smem>>
    %57 = vector.broadcast %56 : f32 to vector<2x256xf32>
    %58 = arith.addf %55, %57 : vector<2x256xf32>
    %cst_34 = arith.constant 0.000000e+00 : f32
    %59 = vector.broadcast %cst_34 : f32 to vector<2x256xf32>
    %60 = arith.maximumf %58, %59 : vector<2x256xf32>
    %61 = arith.negf %60 : vector<2x256xf32>
    %62 = math.exp %61 : vector<2x256xf32>
    %cst_35 = arith.constant 1.000000e+00 : f32
    %63 = vector.broadcast %cst_35 : f32 to vector<2x256xf32>
    %64 = arith.addf %63, %62 : vector<2x256xf32>
    %65 = arith.divf %63, %64 : vector<2x256xf32>
    %c0_36 = arith.constant 0 : index
    %c1_37 = arith.constant 1 : index
    %c0_38 = arith.constant 0 : index
    %66 = vector.load %arg10[%c0_36, %c1_37, %c0_38] : memref<2x16x256xf32, #tpu.memory_space<vmem>>, vector<2x1x256xf32>
    %67 = vector.shape_cast %66 : vector<2x1x256xf32> to vector<2x256xf32>
    %68 = vector.shape_cast %65 : vector<2x256xf32> to vector<2x1x256xf32>
    tpu.vector_store %arg10[%c0_36, %c1_37, %c0_38], %68 {strides = array<i32>} : memref<2x16x256xf32, #tpu.memory_space<vmem>>, vector<2x1x256xf32>,
    %69 = vector.extract_strided_slice %36 {offsets = [0, 2], sizes = [2, 1], strides = [1, 1]} : vector<2x16xf32> to vector<2x1xf32>
    %70 = vector.broadcast %69 : vector<2x1xf32> to vector<2x256xf32>
    %71 = arith.mulf %17, %70 : vector<2x256xf32>
    %c4 = arith.constant 4 : index
    %72 = memref.load %arg1[%c4] : memref<18xf32, #tpu.memory_space<smem>>
    %73 = vector.broadcast %72 : f32 to vector<2x256xf32>
    %74 = arith.addf %71, %73 : vector<2x256xf32>
    %cst_39 = arith.constant 0.000000e+00 : f32
    %75 = vector.broadcast %cst_39 : f32 to vector<2x256xf32>
    %76 = arith.maximumf %74, %75 : vector<2x256xf32>
    %77 = arith.negf %76 : vector<2x256xf32>
    %78 = math.exp %77 : vector<2x256xf32>
    %cst_40 = arith.constant 1.000000e+00 : f32
    %79 = vector.broadcast %cst_40 : f32 to vector<2x256xf32>
    %80 = arith.addf %79, %78 : vector<2x256xf32>
    %81 = arith.divf %79, %80 : vector<2x256xf32>
    %c0_41 = arith.constant 0 : index
    %c2_42 = arith.constant 2 : index
    %c0_43 = arith.constant 0 : index
    %82 = vector.load %arg10[%c0_41, %c2_42, %c0_43] : memref<2x16x256xf32, #tpu.memory_space<vmem>>, vector<2x1x256xf32>
    %83 = vector.shape_cast %82 : vector<2x1x256xf32> to vector<2x256xf32>
    %84 = vector.shape_cast %81 : vector<2x256xf32> to vector<2x1x256xf32>
    tpu.vector_store %arg10[%c0_41, %c2_42, %c0_43], %84 {strides = array<i32>} : memref<2x16x256xf32, #tpu.memory_space<vmem>>, vector<2x1x256xf32>,
    %85 = vector.extract_strided_slice %36 {offsets = [0, 3], sizes = [2, 1], strides = [1, 1]} : vector<2x16xf32> to vector<2x1xf32>
    %86 = vector.broadcast %85 : vector<2x1xf32> to vector<2x256xf32>
    %87 = arith.mulf %17, %86 : vector<2x256xf32>
    %c5 = arith.constant 5 : index
    %88 = memref.load %arg1[%c5] : memref<18xf32, #tpu.memory_space<smem>>
    %89 = vector.broadcast %88 : f32 to vector<2x256xf32>
    %90 = arith.addf %87, %89 : vector<2x256xf32>
    %cst_44 = arith.constant 0.000000e+00 : f32
    %91 = vector.broadcast %cst_44 : f32 to vector<2x256xf32>
    %92 = arith.maximumf %90, %91 : vector<2x256xf32>
    %93 = arith.negf %92 : vector<2x256xf32>
    %94 = math.exp %93 : vector<2x256xf32>
    %cst_45 = arith.constant 1.000000e+00 : f32
    %95 = vector.broadcast %cst_45 : f32 to vector<2x256xf32>
    %96 = arith.addf %95, %94 : vector<2x256xf32>
    %97 = arith.divf %95, %96 : vector<2x256xf32>
    %c0_46 = arith.constant 0 : index
    %c3_47 = arith.constant 3 : index
    %c0_48 = arith.constant 0 : index
    %98 = vector.load %arg10[%c0_46, %c3_47, %c0_48] : memref<2x16x256xf32, #tpu.memory_space<vmem>>, vector<2x1x256xf32>
    %99 = vector.shape_cast %98 : vector<2x1x256xf32> to vector<2x256xf32>
    %100 = vector.shape_cast %97 : vector<2x256xf32> to vector<2x1x256xf32>
    tpu.vector_store %arg10[%c0_46, %c3_47, %c0_48], %100 {strides = array<i32>} : memref<2x16x256xf32, #tpu.memory_space<vmem>>, vector<2x1x256xf32>,
    %101 = vector.extract_strided_slice %36 {offsets = [0, 4], sizes = [2, 1], strides = [1, 1]} : vector<2x16xf32> to vector<2x1xf32>
    %102 = vector.broadcast %101 : vector<2x1xf32> to vector<2x256xf32>
    %103 = arith.mulf %17, %102 : vector<2x256xf32>
    %c6 = arith.constant 6 : index
    %104 = memref.load %arg1[%c6] : memref<18xf32, #tpu.memory_space<smem>>
    %105 = vector.broadcast %104 : f32 to vector<2x256xf32>
    %106 = arith.addf %103, %105 : vector<2x256xf32>
    %cst_49 = arith.constant 0.000000e+00 : f32
    %107 = vector.broadcast %cst_49 : f32 to vector<2x256xf32>
    %108 = arith.maximumf %106, %107 : vector<2x256xf32>
    %109 = arith.negf %108 : vector<2x256xf32>
    %110 = math.exp %109 : vector<2x256xf32>
    %cst_50 = arith.constant 1.000000e+00 : f32
    %111 = vector.broadcast %cst_50 : f32 to vector<2x256xf32>
    %112 = arith.addf %111, %110 : vector<2x256xf32>
    %113 = arith.divf %111, %112 : vector<2x256xf32>
    %c0_51 = arith.constant 0 : index
    %c4_52 = arith.constant 4 : index
    %c0_53 = arith.constant 0 : index
    %114 = vector.load %arg10[%c0_51, %c4_52, %c0_53] : memref<2x16x256xf32, #tpu.memory_space<vmem>>, vector<2x1x256xf32>
    %115 = vector.shape_cast %114 : vector<2x1x256xf32> to vector<2x256xf32>
    %116 = vector.shape_cast %113 : vector<2x256xf32> to vector<2x1x256xf32>
    tpu.vector_store %arg10[%c0_51, %c4_52, %c0_53], %116 {strides = array<i32>} : memref<2x16x256xf32, #tpu.memory_space<vmem>>, vector<2x1x256xf32>,
    %117 = vector.extract_strided_slice %36 {offsets = [0, 5], sizes = [2, 1], strides = [1, 1]} : vector<2x16xf32> to vector<2x1xf32>
    %118 = vector.broadcast %117 : vector<2x1xf32> to vector<2x256xf32>
    %119 = arith.mulf %17, %118 : vector<2x256xf32>
    %c7 = arith.constant 7 : index
    %120 = memref.load %arg1[%c7] : memref<18xf32, #tpu.memory_space<smem>>
    %121 = vector.broadcast %120 : f32 to vector<2x256xf32>
    %122 = arith.addf %119, %121 : vector<2x256xf32>
    %cst_54 = arith.constant 0.000000e+00 : f32
    %123 = vector.broadcast %cst_54 : f32 to vector<2x256xf32>
    %124 = arith.maximumf %122, %123 : vector<2x256xf32>
    %125 = arith.negf %124 : vector<2x256xf32>
    %126 = math.exp %125 : vector<2x256xf32>
    %cst_55 = arith.constant 1.000000e+00 : f32
    %127 = vector.broadcast %cst_55 : f32 to vector<2x256xf32>
    %128 = arith.addf %127, %126 : vector<2x256xf32>
    %129 = arith.divf %127, %128 : vector<2x256xf32>
    %c0_56 = arith.constant 0 : index
    %c5_57 = arith.constant 5 : index
    %c0_58 = arith.constant 0 : index
    %130 = vector.load %arg10[%c0_56, %c5_57, %c0_58] : memref<2x16x256xf32, #tpu.memory_space<vmem>>, vector<2x1x256xf32>
    %131 = vector.shape_cast %130 : vector<2x1x256xf32> to vector<2x256xf32>
    %132 = vector.shape_cast %129 : vector<2x256xf32> to vector<2x1x256xf32>
    tpu.vector_store %arg10[%c0_56, %c5_57, %c0_58], %132 {strides = array<i32>} : memref<2x16x256xf32, #tpu.memory_space<vmem>>, vector<2x1x256xf32>,
    %133 = vector.extract_strided_slice %36 {offsets = [0, 6], sizes = [2, 1], strides = [1, 1]} : vector<2x16xf32> to vector<2x1xf32>
    %134 = vector.broadcast %133 : vector<2x1xf32> to vector<2x256xf32>
    %135 = arith.mulf %17, %134 : vector<2x256xf32>
    %c8 = arith.constant 8 : index
    %136 = memref.load %arg1[%c8] : memref<18xf32, #tpu.memory_space<smem>>
    %137 = vector.broadcast %136 : f32 to vector<2x256xf32>
    %138 = arith.addf %135, %137 : vector<2x256xf32>
    %cst_59 = arith.constant 0.000000e+00 : f32
    %139 = vector.broadcast %cst_59 : f32 to vector<2x256xf32>
    %140 = arith.maximumf %138, %139 : vector<2x256xf32>
    %141 = arith.negf %140 : vector<2x256xf32>
    %142 = math.exp %141 : vector<2x256xf32>
    %cst_60 = arith.constant 1.000000e+00 : f32
    %143 = vector.broadcast %cst_60 : f32 to vector<2x256xf32>
    %144 = arith.addf %143, %142 : vector<2x256xf32>
    %145 = arith.divf %143, %144 : vector<2x256xf32>
    %c0_61 = arith.constant 0 : index
    %c6_62 = arith.constant 6 : index
    %c0_63 = arith.constant 0 : index
    %146 = vector.load %arg10[%c0_61, %c6_62, %c0_63] : memref<2x16x256xf32, #tpu.memory_space<vmem>>, vector<2x1x256xf32>
    %147 = vector.shape_cast %146 : vector<2x1x256xf32> to vector<2x256xf32>
    %148 = vector.shape_cast %145 : vector<2x256xf32> to vector<2x1x256xf32>
    tpu.vector_store %arg10[%c0_61, %c6_62, %c0_63], %148 {strides = array<i32>} : memref<2x16x256xf32, #tpu.memory_space<vmem>>, vector<2x1x256xf32>,
    %149 = vector.extract_strided_slice %36 {offsets = [0, 7], sizes = [2, 1], strides = [1, 1]} : vector<2x16xf32> to vector<2x1xf32>
    %150 = vector.broadcast %149 : vector<2x1xf32> to vector<2x256xf32>
    %151 = arith.mulf %17, %150 : vector<2x256xf32>
    %c9 = arith.constant 9 : index
    %152 = memref.load %arg1[%c9] : memref<18xf32, #tpu.memory_space<smem>>
    %153 = vector.broadcast %152 : f32 to vector<2x256xf32>
    %154 = arith.addf %151, %153 : vector<2x256xf32>
    %cst_64 = arith.constant 0.000000e+00 : f32
    %155 = vector.broadcast %cst_64 : f32 to vector<2x256xf32>
    %156 = arith.maximumf %154, %155 : vector<2x256xf32>
    %157 = arith.negf %156 : vector<2x256xf32>
    %158 = math.exp %157 : vector<2x256xf32>
    %cst_65 = arith.constant 1.000000e+00 : f32
    %159 = vector.broadcast %cst_65 : f32 to vector<2x256xf32>
    %160 = arith.addf %159, %158 : vector<2x256xf32>
    %161 = arith.divf %159, %160 : vector<2x256xf32>
    %c0_66 = arith.constant 0 : index
    %c7_67 = arith.constant 7 : index
    %c0_68 = arith.constant 0 : index
    %162 = vector.load %arg10[%c0_66, %c7_67, %c0_68] : memref<2x16x256xf32, #tpu.memory_space<vmem>>, vector<2x1x256xf32>
    %163 = vector.shape_cast %162 : vector<2x1x256xf32> to vector<2x256xf32>
    %164 = vector.shape_cast %161 : vector<2x256xf32> to vector<2x1x256xf32>
    tpu.vector_store %arg10[%c0_66, %c7_67, %c0_68], %164 {strides = array<i32>} : memref<2x16x256xf32, #tpu.memory_space<vmem>>, vector<2x1x256xf32>,
    %165 = vector.extract_strided_slice %36 {offsets = [0, 8], sizes = [2, 1], strides = [1, 1]} : vector<2x16xf32> to vector<2x1xf32>
    %166 = vector.broadcast %165 : vector<2x1xf32> to vector<2x256xf32>
    %167 = arith.mulf %17, %166 : vector<2x256xf32>
    %c10 = arith.constant 10 : index
    %168 = memref.load %arg1[%c10] : memref<18xf32, #tpu.memory_space<smem>>
    %169 = vector.broadcast %168 : f32 to vector<2x256xf32>
    %170 = arith.addf %167, %169 : vector<2x256xf32>
    %cst_69 = arith.constant 0.000000e+00 : f32
    %171 = vector.broadcast %cst_69 : f32 to vector<2x256xf32>
    %172 = arith.maximumf %170, %171 : vector<2x256xf32>
    %173 = arith.negf %172 : vector<2x256xf32>
    %174 = math.exp %173 : vector<2x256xf32>
    %cst_70 = arith.constant 1.000000e+00 : f32
    %175 = vector.broadcast %cst_70 : f32 to vector<2x256xf32>
    %176 = arith.addf %175, %174 : vector<2x256xf32>
    %177 = arith.divf %175, %176 : vector<2x256xf32>
    %c0_71 = arith.constant 0 : index
    %c8_72 = arith.constant 8 : index
    %c0_73 = arith.constant 0 : index
    %178 = vector.load %arg10[%c0_71, %c8_72, %c0_73] : memref<2x16x256xf32, #tpu.memory_space<vmem>>, vector<2x1x256xf32>
    %179 = vector.shape_cast %178 : vector<2x1x256xf32> to vector<2x256xf32>
    %180 = vector.shape_cast %177 : vector<2x256xf32> to vector<2x1x256xf32>
    tpu.vector_store %arg10[%c0_71, %c8_72, %c0_73], %180 {strides = array<i32>} : memref<2x16x256xf32, #tpu.memory_space<vmem>>, vector<2x1x256xf32>,
    %181 = vector.extract_strided_slice %36 {offsets = [0, 9], sizes = [2, 1], strides = [1, 1]} : vector<2x16xf32> to vector<2x1xf32>
    %182 = vector.broadcast %181 : vector<2x1xf32> to vector<2x256xf32>
    %183 = arith.mulf %17, %182 : vector<2x256xf32>
    %c11 = arith.constant 11 : index
    %184 = memref.load %arg1[%c11] : memref<18xf32, #tpu.memory_space<smem>>
    %185 = vector.broadcast %184 : f32 to vector<2x256xf32>
    %186 = arith.addf %183, %185 : vector<2x256xf32>
    %cst_74 = arith.constant 0.000000e+00 : f32
    %187 = vector.broadcast %cst_74 : f32 to vector<2x256xf32>
    %188 = arith.maximumf %186, %187 : vector<2x256xf32>
    %189 = arith.negf %188 : vector<2x256xf32>
    %190 = math.exp %189 : vector<2x256xf32>
    %cst_75 = arith.constant 1.000000e+00 : f32
    %191 = vector.broadcast %cst_75 : f32 to vector<2x256xf32>
    %192 = arith.addf %191, %190 : vector<2x256xf32>
    %193 = arith.divf %191, %192 : vector<2x256xf32>
    %c0_76 = arith.constant 0 : index
    %c9_77 = arith.constant 9 : index
    %c0_78 = arith.constant 0 : index
    %194 = vector.load %arg10[%c0_76, %c9_77, %c0_78] : memref<2x16x256xf32, #tpu.memory_space<vmem>>, vector<2x1x256xf32>
    %195 = vector.shape_cast %194 : vector<2x1x256xf32> to vector<2x256xf32>
    %196 = vector.shape_cast %193 : vector<2x256xf32> to vector<2x1x256xf32>
    tpu.vector_store %arg10[%c0_76, %c9_77, %c0_78], %196 {strides = array<i32>} : memref<2x16x256xf32, #tpu.memory_space<vmem>>, vector<2x1x256xf32>,
    %197 = vector.extract_strided_slice %36 {offsets = [0, 10], sizes = [2, 1], strides = [1, 1]} : vector<2x16xf32> to vector<2x1xf32>
    %198 = vector.broadcast %197 : vector<2x1xf32> to vector<2x256xf32>
    %199 = arith.mulf %17, %198 : vector<2x256xf32>
    %c12 = arith.constant 12 : index
    %200 = memref.load %arg1[%c12] : memref<18xf32, #tpu.memory_space<smem>>
    %201 = vector.broadcast %200 : f32 to vector<2x256xf32>
    %202 = arith.addf %199, %201 : vector<2x256xf32>
    %cst_79 = arith.constant 0.000000e+00 : f32
    %203 = vector.broadcast %cst_79 : f32 to vector<2x256xf32>
    %204 = arith.maximumf %202, %203 : vector<2x256xf32>
    %205 = arith.negf %204 : vector<2x256xf32>
    %206 = math.exp %205 : vector<2x256xf32>
    %cst_80 = arith.constant 1.000000e+00 : f32
    %207 = vector.broadcast %cst_80 : f32 to vector<2x256xf32>
    %208 = arith.addf %207, %206 : vector<2x256xf32>
    %209 = arith.divf %207, %208 : vector<2x256xf32>
    %c0_81 = arith.constant 0 : index
    %c10_82 = arith.constant 10 : index
    %c0_83 = arith.constant 0 : index
    %210 = vector.load %arg10[%c0_81, %c10_82, %c0_83] : memref<2x16x256xf32, #tpu.memory_space<vmem>>, vector<2x1x256xf32>
    %211 = vector.shape_cast %210 : vector<2x1x256xf32> to vector<2x256xf32>
    %212 = vector.shape_cast %209 : vector<2x256xf32> to vector<2x1x256xf32>
    tpu.vector_store %arg10[%c0_81, %c10_82, %c0_83], %212 {strides = array<i32>} : memref<2x16x256xf32, #tpu.memory_space<vmem>>, vector<2x1x256xf32>,
    %213 = vector.extract_strided_slice %36 {offsets = [0, 11], sizes = [2, 1], strides = [1, 1]} : vector<2x16xf32> to vector<2x1xf32>
    %214 = vector.broadcast %213 : vector<2x1xf32> to vector<2x256xf32>
    %215 = arith.mulf %17, %214 : vector<2x256xf32>
    %c13 = arith.constant 13 : index
    %216 = memref.load %arg1[%c13] : memref<18xf32, #tpu.memory_space<smem>>
    %217 = vector.broadcast %216 : f32 to vector<2x256xf32>
    %218 = arith.addf %215, %217 : vector<2x256xf32>
    %cst_84 = arith.constant 0.000000e+00 : f32
    %219 = vector.broadcast %cst_84 : f32 to vector<2x256xf32>
    %220 = arith.maximumf %218, %219 : vector<2x256xf32>
    %221 = arith.negf %220 : vector<2x256xf32>
    %222 = math.exp %221 : vector<2x256xf32>
    %cst_85 = arith.constant 1.000000e+00 : f32
    %223 = vector.broadcast %cst_85 : f32 to vector<2x256xf32>
    %224 = arith.addf %223, %222 : vector<2x256xf32>
    %225 = arith.divf %223, %224 : vector<2x256xf32>
    %c0_86 = arith.constant 0 : index
    %c11_87 = arith.constant 11 : index
    %c0_88 = arith.constant 0 : index
    %226 = vector.load %arg10[%c0_86, %c11_87, %c0_88] : memref<2x16x256xf32, #tpu.memory_space<vmem>>, vector<2x1x256xf32>
    %227 = vector.shape_cast %226 : vector<2x1x256xf32> to vector<2x256xf32>
    %228 = vector.shape_cast %225 : vector<2x256xf32> to vector<2x1x256xf32>
    tpu.vector_store %arg10[%c0_86, %c11_87, %c0_88], %228 {strides = array<i32>} : memref<2x16x256xf32, #tpu.memory_space<vmem>>, vector<2x1x256xf32>,
    %229 = vector.extract_strided_slice %36 {offsets = [0, 12], sizes = [2, 1], strides = [1, 1]} : vector<2x16xf32> to vector<2x1xf32>
    %230 = vector.broadcast %229 : vector<2x1xf32> to vector<2x256xf32>
    %231 = arith.mulf %17, %230 : vector<2x256xf32>
    %c14 = arith.constant 14 : index
    %232 = memref.load %arg1[%c14] : memref<18xf32, #tpu.memory_space<smem>>
    %233 = vector.broadcast %232 : f32 to vector<2x256xf32>
    %234 = arith.addf %231, %233 : vector<2x256xf32>
    %cst_89 = arith.constant 0.000000e+00 : f32
    %235 = vector.broadcast %cst_89 : f32 to vector<2x256xf32>
    %236 = arith.maximumf %234, %235 : vector<2x256xf32>
    %237 = arith.negf %236 : vector<2x256xf32>
    %238 = math.exp %237 : vector<2x256xf32>
    %cst_90 = arith.constant 1.000000e+00 : f32
    %239 = vector.broadcast %cst_90 : f32 to vector<2x256xf32>
    %240 = arith.addf %239, %238 : vector<2x256xf32>
    %241 = arith.divf %239, %240 : vector<2x256xf32>
    %c0_91 = arith.constant 0 : index
    %c12_92 = arith.constant 12 : index
    %c0_93 = arith.constant 0 : index
    %242 = vector.load %arg10[%c0_91, %c12_92, %c0_93] : memref<2x16x256xf32, #tpu.memory_space<vmem>>, vector<2x1x256xf32>
    %243 = vector.shape_cast %242 : vector<2x1x256xf32> to vector<2x256xf32>
    %244 = vector.shape_cast %241 : vector<2x256xf32> to vector<2x1x256xf32>
    tpu.vector_store %arg10[%c0_91, %c12_92, %c0_93], %244 {strides = array<i32>} : memref<2x16x256xf32, #tpu.memory_space<vmem>>, vector<2x1x256xf32>,
    %245 = vector.extract_strided_slice %36 {offsets = [0, 13], sizes = [2, 1], strides = [1, 1]} : vector<2x16xf32> to vector<2x1xf32>
    %246 = vector.broadcast %245 : vector<2x1xf32> to vector<2x256xf32>
    %247 = arith.mulf %17, %246 : vector<2x256xf32>
    %c15 = arith.constant 15 : index
    %248 = memref.load %arg1[%c15] : memref<18xf32, #tpu.memory_space<smem>>
    %249 = vector.broadcast %248 : f32 to vector<2x256xf32>
    %250 = arith.addf %247, %249 : vector<2x256xf32>
    %cst_94 = arith.constant 0.000000e+00 : f32
    %251 = vector.broadcast %cst_94 : f32 to vector<2x256xf32>
    %252 = arith.maximumf %250, %251 : vector<2x256xf32>
    %253 = arith.negf %252 : vector<2x256xf32>
    %254 = math.exp %253 : vector<2x256xf32>
    %cst_95 = arith.constant 1.000000e+00 : f32
    %255 = vector.broadcast %cst_95 : f32 to vector<2x256xf32>
    %256 = arith.addf %255, %254 : vector<2x256xf32>
    %257 = arith.divf %255, %256 : vector<2x256xf32>
    %c0_96 = arith.constant 0 : index
    %c13_97 = arith.constant 13 : index
    %c0_98 = arith.constant 0 : index
    %258 = vector.load %arg10[%c0_96, %c13_97, %c0_98] : memref<2x16x256xf32, #tpu.memory_space<vmem>>, vector<2x1x256xf32>
    %259 = vector.shape_cast %258 : vector<2x1x256xf32> to vector<2x256xf32>
    %260 = vector.shape_cast %257 : vector<2x256xf32> to vector<2x1x256xf32>
    tpu.vector_store %arg10[%c0_96, %c13_97, %c0_98], %260 {strides = array<i32>} : memref<2x16x256xf32, #tpu.memory_space<vmem>>, vector<2x1x256xf32>,
    %261 = vector.extract_strided_slice %36 {offsets = [0, 14], sizes = [2, 1], strides = [1, 1]} : vector<2x16xf32> to vector<2x1xf32>
    %262 = vector.broadcast %261 : vector<2x1xf32> to vector<2x256xf32>
    %263 = arith.mulf %17, %262 : vector<2x256xf32>
    %c16 = arith.constant 16 : index
    %264 = memref.load %arg1[%c16] : memref<18xf32, #tpu.memory_space<smem>>
    %265 = vector.broadcast %264 : f32 to vector<2x256xf32>
    %266 = arith.addf %263, %265 : vector<2x256xf32>
    %cst_99 = arith.constant 0.000000e+00 : f32
    %267 = vector.broadcast %cst_99 : f32 to vector<2x256xf32>
    %268 = arith.maximumf %266, %267 : vector<2x256xf32>
    %269 = arith.negf %268 : vector<2x256xf32>
    %270 = math.exp %269 : vector<2x256xf32>
    %cst_100 = arith.constant 1.000000e+00 : f32
    %271 = vector.broadcast %cst_100 : f32 to vector<2x256xf32>
    %272 = arith.addf %271, %270 : vector<2x256xf32>
    %273 = arith.divf %271, %272 : vector<2x256xf32>
    %c0_101 = arith.constant 0 : index
    %c14_102 = arith.constant 14 : index
    %c0_103 = arith.constant 0 : index
    %274 = vector.load %arg10[%c0_101, %c14_102, %c0_103] : memref<2x16x256xf32, #tpu.memory_space<vmem>>, vector<2x1x256xf32>
    %275 = vector.shape_cast %274 : vector<2x1x256xf32> to vector<2x256xf32>
    %276 = vector.shape_cast %273 : vector<2x256xf32> to vector<2x1x256xf32>
    tpu.vector_store %arg10[%c0_101, %c14_102, %c0_103], %276 {strides = array<i32>} : memref<2x16x256xf32, #tpu.memory_space<vmem>>, vector<2x1x256xf32>,
    %277 = vector.extract_strided_slice %36 {offsets = [0, 15], sizes = [2, 1], strides = [1, 1]} : vector<2x16xf32> to vector<2x1xf32>
    %278 = vector.broadcast %277 : vector<2x1xf32> to vector<2x256xf32>
    %279 = arith.mulf %17, %278 : vector<2x256xf32>
    %c17 = arith.constant 17 : index
    %280 = memref.load %arg1[%c17] : memref<18xf32, #tpu.memory_space<smem>>
    %281 = vector.broadcast %280 : f32 to vector<2x256xf32>
    %282 = arith.addf %279, %281 : vector<2x256xf32>
    %cst_104 = arith.constant 0.000000e+00 : f32
    %283 = vector.broadcast %cst_104 : f32 to vector<2x256xf32>
    %284 = arith.maximumf %282, %283 : vector<2x256xf32>
    %285 = arith.negf %284 : vector<2x256xf32>
    %286 = math.exp %285 : vector<2x256xf32>
    %cst_105 = arith.constant 1.000000e+00 : f32
    %287 = vector.broadcast %cst_105 : f32 to vector<2x256xf32>
    %288 = arith.addf %287, %286 : vector<2x256xf32>
    %289 = arith.divf %287, %288 : vector<2x256xf32>
    %c0_106 = arith.constant 0 : index
    %c15_107 = arith.constant 15 : index
    %c0_108 = arith.constant 0 : index
    %290 = vector.load %arg10[%c0_106, %c15_107, %c0_108] : memref<2x16x256xf32, #tpu.memory_space<vmem>>, vector<2x1x256xf32>
    %291 = vector.shape_cast %290 : vector<2x1x256xf32> to vector<2x256xf32>
    %292 = vector.shape_cast %289 : vector<2x256xf32> to vector<2x1x256xf32>
    tpu.vector_store %arg10[%c0_106, %c15_107, %c0_108], %292 {strides = array<i32>} : memref<2x16x256xf32, #tpu.memory_space<vmem>>, vector<2x1x256xf32>,
    return
  }
  func.func @transform_0(%arg0: i32) -> i32 {
    %c0_i32 = arith.constant 0 : i32
    %c0_i32_0 = arith.constant 0 : i32
    return %c0_i32 : i32
  }
  func.func @transform_1(%arg0: i32) -> (i32, i32, i32) {
    %c0_i32 = arith.constant 0 : i32
    %c0_i32_0 = arith.constant 0 : i32
    %c0_i32_1 = arith.constant 0 : i32
    return %arg0, %c0_i32, %c0_i32_0 : i32, i32, i32
  }
  func.func @transform_2(%arg0: i32) -> (i32, i32) {
    %c0_i32 = arith.constant 0 : i32
    %c0_i32_0 = arith.constant 0 : i32
    %c0_i32_1 = arith.constant 0 : i32
    return %c0_i32, %c0_i32_0 : i32, i32
  }
  func.func @transform_3(%arg0: i32) -> (i32, i32) {
    %c0_i32 = arith.constant 0 : i32
    %c0_i32_0 = arith.constant 0 : i32
    %c0_i32_1 = arith.constant 0 : i32
    return %c0_i32, %c0_i32_0 : i32, i32
  }
  func.func @transform_4(%arg0: i32) -> (i32, i32) {
    %c0_i32 = arith.constant 0 : i32
    %c0_i32_0 = arith.constant 0 : i32
    %c0_i32_1 = arith.constant 0 : i32
    return %c0_i32, %c0_i32_0 : i32, i32
  }
  func.func @transform_5(%arg0: i32) -> (i32, i32) {
    %c0_i32 = arith.constant 0 : i32
    %c0_i32_0 = arith.constant 0 : i32
    %c0_i32_1 = arith.constant 0 : i32
    return %c0_i32, %c0_i32_0 : i32, i32
  }
  func.func @transform_6(%arg0: i32) -> (i32, i32) {
    %c0_i32 = arith.constant 0 : i32
    %c0_i32_0 = arith.constant 0 : i32
    %c0_i32_1 = arith.constant 0 : i32
    return %c0_i32, %c0_i32_0 : i32, i32
  }
  func.func @transform_7(%arg0: i32) -> (i32, i32) {
    %c0_i32 = arith.constant 0 : i32
    %c0_i32_0 = arith.constant 0 : i32
    %c0_i32_1 = arith.constant 0 : i32
    return %c0_i32, %c0_i32_0 : i32, i32
  }
  func.func @transform_8(%arg0: i32) -> (i32, i32) {
    %c0_i32 = arith.constant 0 : i32
    %c0_i32_0 = arith.constant 0 : i32
    %c0_i32_1 = arith.constant 0 : i32
    return %c0_i32, %c0_i32_0 : i32, i32
  }
  func.func @transform_9(%arg0: i32) -> (i32, i32, i32) {
    %c0_i32 = arith.constant 0 : i32
    %c0_i32_0 = arith.constant 0 : i32
    %c0_i32_1 = arith.constant 0 : i32
    return %arg0, %c0_i32, %c0_i32_0 : i32, i32, i32
  }
}

</mosaic_0001>

<llo_original>
// kernel: tpu_custom_call.1
$region0: #{tpu_custom_call.1}
  #allocation0 [shape = 'u32[]', space=smem, size = 0x4, offset = 0x4, fixed_abs, tag = 'smem constant byte address 0x4 - core index']
  #allocation1 [shape = 'u32[144,128]{1,0:T(1,128)}', space=vmem, size = 0x12000, scoped, tag = 'internal scratch']
  %s0 = inlined_call_operand.vmem [shape: f32[18], index: 0, kind: input, shape index: {}]
  %s1 = inlined_call_operand.vmem [shape: f32[2,16,256], index: 1, kind: input, shape index: {}]
  %s2 = inlined_call_operand.vmem [shape: f32[256,64], index: 2, kind: input, shape index: {}]
  %s3 = inlined_call_operand.vmem [shape: f32[64,256], index: 3, kind: input, shape index: {}]
  %s4 = inlined_call_operand.vmem [shape: f32[16,128], index: 4, kind: input, shape index: {}]
  %s5 = inlined_call_operand.vmem [shape: f32[1,128], index: 5, kind: input, shape index: {}]
  %s6 = inlined_call_operand.vmem [shape: f32[128,16], index: 6, kind: input, shape index: {}]
  %s7 = inlined_call_operand.vmem [shape: f32[1,16], index: 7, kind: input, shape index: {}]
  %s8 = inlined_call_operand.vmem [shape: f32[16,16], index: 8, kind: input, shape index: {}]
  %s9 = inlined_call_operand.hbm [shape: f32[2,16,256], index: 9, kind: output, shape index: {}]
  %s10 = sld [smem:[#allocation0]]
  $region50: #{tpu_custom_call.1} parent=0
    _
  %s12 = ssub.s32 1, %s10
  %s13 = scalar_select 0, %s12, %s10
  $region1: #{tpu_custom_call.1} parent=0
    #allocation2 [shape = 'u8[512]{0}', space=smem, size = 0x200, scoped, tag = 'input window, operand 0, single buffered']
    #allocation3 [shape = 's32[1]{0}', space=sflag, size = 0x4, scoped, tag = 'scoped memory for tpu_custom_call.1']
    #allocation4 [shape = 's32[1]{0}', space=sflag, size = 0x4, scoped, tag = 'scoped memory for tpu_custom_call.1']
    #allocation5 [shape = 'u8[32768]{0}', space=vmem, size = 0x8000, scoped, tag = 'output window, operand 0, single buffered']
    %14 = vsyncpa [#allocation4], 0
    %15 = vsyncpa [#allocation3], 0
    // Predicated region
    $region2: #{tpu_custom_call.1} parent=1 // pred_check
      _
    $region3: #{tpu_custom_call.1} parent=1 // pred_check_branch
      %17 = sbr.rel (0) target = $region5
    $region4: #{tpu_custom_call.1} parent=1 // pred_region
      %s19 = ssub.s32 16, 16
      %20 = vsyncadd [#allocation4], %s19
      %s22 = sshll.u32 %s0, 4
      %s23 = int_to_ptr.vmem [resolvable:$true] %s22
      %25 = dma.vmem_to_smem %s23, 16, [#allocation2], [#allocation4]
    $region5: #{tpu_custom_call.1} parent=1 // pred_fallthru
      _
    // Predicated region
    $region6: #{tpu_custom_call.1} parent=1 // pred_check
      _
    $region7: #{tpu_custom_call.1} parent=1 // pred_check_branch
      %27 = sbr.rel (0) target = $region9
    $region8: #{tpu_custom_call.1} parent=1 // pred_region
      _
    $region9: #{tpu_custom_call.1} parent=1 // pred_fallthru
      _
    // Predicated region
    $region10: #{tpu_custom_call.1} parent=1 // pred_check
      _
    $region11: #{tpu_custom_call.1} parent=1 // pred_check_branch
      %29 = sbr.rel (0) target = $region13
    $region12: #{tpu_custom_call.1} parent=1 // pred_region
      _
    $region13: #{tpu_custom_call.1} parent=1 // pred_fallthru
      _
    // Predicated region
    $region14: #{tpu_custom_call.1} parent=1 // pred_check
      _
    $region15: #{tpu_custom_call.1} parent=1 // pred_check_branch
      %31 = sbr.rel (0) target = $region17
    $region16: #{tpu_custom_call.1} parent=1 // pred_region
      _
    $region17: #{tpu_custom_call.1} parent=1 // pred_fallthru
      _
    // Predicated region
    $region18: #{tpu_custom_call.1} parent=1 // pred_check
      _
    $region19: #{tpu_custom_call.1} parent=1 // pred_check_branch
      %33 = sbr.rel (0) target = $region21
    $region20: #{tpu_custom_call.1} parent=1 // pred_region
      _
    $region21: #{tpu_custom_call.1} parent=1 // pred_fallthru
      _
    // Predicated region
    $region22: #{tpu_custom_call.1} parent=1 // pred_check
      _
    $region23: #{tpu_custom_call.1} parent=1 // pred_check_branch
      %35 = sbr.rel (0) target = $region25
    $region24: #{tpu_custom_call.1} parent=1 // pred_region
      _
    $region25: #{tpu_custom_call.1} parent=1 // pred_fallthru
      _
    // Predicated region
    $region26: #{tpu_custom_call.1} parent=1 // pred_check
      _
    $region27: #{tpu_custom_call.1} parent=1 // pred_check_branch
      %37 = sbr.rel (0) target = $region29
    $region28: #{tpu_custom_call.1} parent=1 // pred_region
      _
    $region29: #{tpu_custom_call.1} parent=1 // pred_fallthru
      _
    // Predicated region
    $region30: #{tpu_custom_call.1} parent=1 // pred_check
      _
    $region31: #{tpu_custom_call.1} parent=1 // pred_check_branch
      %39 = sbr.rel (0) target = $region33
    $region32: #{tpu_custom_call.1} parent=1 // pred_region
      _
    $region33: #{tpu_custom_call.1} parent=1 // pred_fallthru
      _
    // Predicated region
    $region34: #{tpu_custom_call.1} parent=1 // pred_check
      _
    $region35: #{tpu_custom_call.1} parent=1 // pred_check_branch
      %41 = sbr.rel (0) target = $region37
    $region36: #{tpu_custom_call.1} parent=1 // pred_region
      _
    $region37: #{tpu_custom_call.1} parent=1 // pred_fallthru
      _
    // Predicated region
    $region38: #{tpu_custom_call.1} parent=1 // pred_check
      _
    $region39: #{tpu_custom_call.1} parent=1 // pred_check_branch
      %43 = sbr.rel (0) target = $region41
    $region40: #{tpu_custom_call.1} parent=1 // pred_region
      %44 = dma.done [#allocation4], 16
    $region41: #{tpu_custom_call.1} parent=1 // pred_fallthru
      _
    %45 = sfence
    %v46 = vld [vmem:[%s1] sm:$0xff]
    %v47 = vld [vmem:[%s1 + $0x8] sm:$0xff]
    %v48 = vld [vmem:[%s1 + $0x10] sm:$0xff]
    %v49 = vld [vmem:[%s1 + $0x18] sm:$0xff]
    %v50 = vld [vmem:[%s1 + $0x20] sm:$0xff]
    %v51 = vld [vmem:[%s1 + $0x28] sm:$0xff]
    %v52 = vld [vmem:[%s1 + $0x30] sm:$0xff]
    %v53 = vld [vmem:[%s1 + $0x38] sm:$0xff]
    %v54 = vadd.f32 %v46, %v48
    %v55 = vrot.slane %v54, 4
    %v56 = vadd.f32 %v54, %v55
    %v57 = vrot.slane %v56, 2
    %v58 = vadd.f32 %v56, %v57
    %v59 = vrot.slane %v58, 1
    %v60 = vadd.f32 %v58, %v59
    %v61 = vadd.f32 %v47, %v49
    %v62 = vrot.slane %v61, 4
    %v63 = vadd.f32 %v61, %v62
    %v64 = vrot.slane %v63, 2
    %v65 = vadd.f32 %v63, %v64
    %v66 = vrot.slane %v65, 1
    %v67 = vadd.f32 %v65, %v66
    %v68 = vadd.f32 %v50, %v52
    %v69 = vrot.slane %v68, 4
    %v70 = vadd.f32 %v68, %v69
    %v71 = vrot.slane %v70, 2
    %v72 = vadd.f32 %v70, %v71
    %v73 = vrot.slane %v72, 1
    %v74 = vadd.f32 %v72, %v73
    %v75 = vadd.f32 %v51, %v53
    %v76 = vrot.slane %v75, 4
    %v77 = vadd.f32 %v75, %v76
    %v78 = vrot.slane %v77, 2
    %v79 = vadd.f32 %v77, %v78
    %v80 = vrot.slane %v79, 1
    %v81 = vadd.f32 %v79, %v80
    %v82 = vrcp.pop 16.0
    %v83 = vmul.f32 %v60, %v82
    %v84 = vmul.f32 %v67, %v82
    %v85 = vmul.f32 %v74, %v82
    %v86 = vmul.f32 %v81, %v82
    %v87 = vld [vmem:[%s2] sm:$0xff]
    %v88 = vld [vmem:[%s2 + $0x8] sm:$0xff]
    %v89 = vld [vmem:[%s2 + $0x10] sm:$0xff]
    %v90 = vld [vmem:[%s2 + $0x18] sm:$0xff]
    %v91 = vld [vmem:[%s2 + $0x20] sm:$0xff]
    %v92 = vld [vmem:[%s2 + $0x28] sm:$0xff]
    %v93 = vld [vmem:[%s2 + $0x30] sm:$0xff]
    %v94 = vld [vmem:[%s2 + $0x38] sm:$0xff]
    %v95 = vld [vmem:[%s2 + $0x40] sm:$0xff]
    %v96 = vld [vmem:[%s2 + $0x48] sm:$0xff]
    %v97 = vld [vmem:[%s2 + $0x50] sm:$0xff]
    %v98 = vld [vmem:[%s2 + $0x58] sm:$0xff]
    %v99 = vld [vmem:[%s2 + $0x60] sm:$0xff]
    %v100 = vld [vmem:[%s2 + $0x68] sm:$0xff]
    %v101 = vld [vmem:[%s2 + $0x70] sm:$0xff]
    %v102 = vld [vmem:[%s2 + $0x78] sm:$0xff]
    %v103 = vld [vmem:[%s2 + $0x80] sm:$0xff]
    %v104 = vld [vmem:[%s2 + $0x88] sm:$0xff]
    %v105 = vld [vmem:[%s2 + $0x90] sm:$0xff]
    %v106 = vld [vmem:[%s2 + $0x98] sm:$0xff]
    %v107 = vld [vmem:[%s2 + $0xa0] sm:$0xff]
    %v108 = vld [vmem:[%s2 + $0xa8] sm:$0xff]
    %v109 = vld [vmem:[%s2 + $0xb0] sm:$0xff]
    %v110 = vld [vmem:[%s2 + $0xb8] sm:$0xff]
    %v111 = vld [vmem:[%s2 + $0xc0] sm:$0xff]
    %v112 = vld [vmem:[%s2 + $0xc8] sm:$0xff]
    %v113 = vld [vmem:[%s2 + $0xd0] sm:$0xff]
    %v114 = vld [vmem:[%s2 + $0xd8] sm:$0xff]
    %v115 = vld [vmem:[%s2 + $0xe0] sm:$0xff]
    %v116 = vld [vmem:[%s2 + $0xe8] sm:$0xff]
    %v117 = vld [vmem:[%s2 + $0xf0] sm:$0xff]
    %v118 = vld [vmem:[%s2 + $0xf8] sm:$0xff]
    %s119 = sld [smem:[#allocation2]]
    %v120 = vstv %s119
    %vm125 = vcmask 1041409
    %v126 = vsel %vm125, %v85, %v83
    %v127 = vsel %vm125, %v86, %v84
    %130 = vmatprep.subr.mxu0 0.0
    %131 = vmatpush1.msra.mxu0 %v87
    %132 = vmatprep.subr.mxu0 0.0
    %133 = vmatpush1.msra.mxu0 %v88
    %134 = vmatprep.subr.mxu0 0.0
    %135 = vmatpush1.msra.mxu0 %v89
    %136 = vmatprep.subr.mxu0 0.0
    %137 = vmatpush1.msra.mxu0 %v90
    %138 = vmatprep.subr.mxu0 0.0
    %139 = vmatpush1.msra.mxu0 %v91
    %140 = vmatprep.subr.mxu0 0.0
    %141 = vmatpush1.msra.mxu0 %v92
    %142 = vmatprep.subr.mxu0 0.0
    %143 = vmatpush1.msra.mxu0 %v93
    %144 = vmatprep.subr.mxu0 0.0
    %145 = vmatpush1.msra.mxu0 %v94
    %146 = vmatprep.subr.mxu0 0.0
    %147 = vmatpush1.msra.mxu0 %v95
    %148 = vmatprep.subr.mxu0 0.0
    %149 = vmatpush1.msra.mxu0 %v96
    %150 = vmatprep.subr.mxu0 0.0
    %151 = vmatpush1.msra.mxu0 %v97
    %152 = vmatprep.subr.mxu0 0.0
    %153 = vmatpush1.msra.mxu0 %v98
    %154 = vmatprep.subr.mxu0 0.0
    %155 = vmatpush1.msra.mxu0 %v99
    %156 = vmatprep.subr.mxu0 0.0
    %157 = vmatpush1.msra.mxu0 %v100
    %158 = vmatprep.subr.mxu0 0.0
    %159 = vmatpush1.msra.mxu0 %v101
    %160 = vmatprep.subr.mxu0 0.0
    %161 = vmatpush1.msra.mxu0 %v102
    %162 = vmatprep.subr.mxu0 0.0
    %163 = vmatpush1.msra.mxu0 %v103
    %164 = vmatprep.subr.mxu0 0.0
    %165 = vmatpush1.msra.mxu0 %v104
    %166 = vmatprep.subr.mxu0 0.0
    %167 = vmatpush1.msra.mxu0 %v105
    %168 = vmatprep.subr.mxu0 0.0
    %169 = vmatpush1.msra.mxu0 %v106
    %170 = vmatprep.subr.mxu0 0.0
    %171 = vmatpush1.msra.mxu0 %v107
    %172 = vmatprep.subr.mxu0 0.0
    %173 = vmatpush1.msra.mxu0 %v108
    %174 = vmatprep.subr.mxu0 0.0
    %175 = vmatpush1.msra.mxu0 %v109
    %176 = vmatprep.subr.mxu0 0.0
    %177 = vmatpush1.msra.mxu0 %v110
    %178 = vmatprep.subr.mxu0 0.0
    %179 = vmatpush1.msra.mxu0 %v111
    %180 = vmatprep.subr.mxu0 0.0
    %181 = vmatpush1.msra.mxu0 %v112
    %182 = vmatprep.subr.mxu0 0.0
    %183 = vmatpush1.msra.mxu0 %v113
    %184 = vmatprep.subr.mxu0 0.0
    %185 = vmatpush1.msra.mxu0 %v114
    %186 = vmatprep.subr.mxu0 0.0
    %187 = vmatpush1.msra.mxu0 %v115
    %188 = vmatprep.subr.mxu0 0.0
    %189 = vmatpush1.msra.mxu0 %v116
    %190 = vmatprep.subr.mxu0 0.0
    %191 = vmatpush1.msra.mxu0 %v117
    %192 = vmatprep.subr.mxu0 0.0
    %193 = vmatpush1.msra.mxu0 %v118
    %194 = vmatprep.mubr.f32.mxu0 %v127
    %195 = vmatmul.mubr.f32.gmra.mrb[0].mxu0 %v126
    %v196 = vpop.f32.mrb[0].mxu0
    %v197 = vadd.f32 %v120, %v196
    %v198 = vpop.f32.mrb[0].mxu0
    %199 = vdwg.mxu0
    %v200 = vmax.f32 %v197, 0.0
    %v201 = vld [vmem:[%s3] sm:$0xff]
    %v202 = vld [vmem:[%s3 + $0x8] sm:$0xff]
    %v203 = vld [vmem:[%s3 + $0x10] sm:$0xff]
    %v204 = vld [vmem:[%s3 + $0x18] sm:$0xff]
    %v205 = vld [vmem:[%s3 + $0x20] sm:$0xff]
    %v206 = vld [vmem:[%s3 + $0x28] sm:$0xff]
    %v207 = vld [vmem:[%s3 + $0x30] sm:$0xff]
    %v208 = vld [vmem:[%s3 + $0x38] sm:$0xff]
    %v209 = vld [vmem:[%s3 + $0x40] sm:$0xff]
    %v210 = vld [vmem:[%s3 + $0x48] sm:$0xff]
    %v211 = vld [vmem:[%s3 + $0x50] sm:$0xff]
    %v212 = vld [vmem:[%s3 + $0x58] sm:$0xff]
    %v213 = vld [vmem:[%s3 + $0x60] sm:$0xff]
    %v214 = vld [vmem:[%s3 + $0x68] sm:$0xff]
    %v215 = vld [vmem:[%s3 + $0x70] sm:$0xff]
    %v216 = vld [vmem:[%s3 + $0x78] sm:$0xff]
    %s217 = sld [smem:[#allocation2 + $0x1]]
    %v218 = vstv %s217
    %vm219 = vcmask 523264
    %v221 = vsel %vm219, %v200, 0
    %223 = vmatprep.subr.mxu0 %v202
    %224 = vmatpush1.msra.mxu0 %v201
    %225 = vmatprep.subr.mxu0 %v204
    %226 = vmatpush1.msra.mxu0 %v203
    %227 = vmatprep.subr.mxu0 %v206
    %228 = vmatpush1.msra.mxu0 %v205
    %229 = vmatprep.subr.mxu0 %v208
    %230 = vmatpush1.msra.mxu0 %v207
    %231 = vmatprep.subr.mxu0 %v210
    %232 = vmatpush1.msra.mxu0 %v209
    %233 = vmatprep.subr.mxu0 %v212
    %234 = vmatpush1.msra.mxu0 %v211
    %235 = vmatprep.subr.mxu0 %v214
    %236 = vmatpush1.msra.mxu0 %v213
    %237 = vmatprep.subr.mxu0 %v216
    %238 = vmatpush1.msra.mxu0 %v215
    %239 = vmatprep.subr.mxu0 0.0
    %240 = vmatpush1.msra.mxu0 0.0
    %241 = vmatprep.subr.mxu0 0.0
    %242 = vmatpush1.msra.mxu0 0.0
    %243 = vmatprep.subr.mxu0 0.0
    %244 = vmatpush1.msra.mxu0 0.0
    %245 = vmatprep.subr.mxu0 0.0
    %246 = vmatpush1.msra.mxu0 0.0
    %247 = vmatprep.subr.mxu0 0.0
    %248 = vmatpush1.msra.mxu0 0.0
    %249 = vmatprep.subr.mxu0 0.0
    %250 = vmatpush1.msra.mxu0 0.0
    %251 = vmatprep.subr.mxu0 0.0
    %252 = vmatpush1.msra.mxu0 0.0
    %253 = vmatprep.subr.mxu0 0.0
    %254 = vmatpush1.msra.mxu0 0.0
    %255 = vmatprep.subr.mxu0 0.0
    %256 = vmatpush1.msra.mxu0 0.0
    %257 = vmatprep.subr.mxu0 0.0
    %258 = vmatpush1.msra.mxu0 0.0
    %259 = vmatprep.subr.mxu0 0.0
    %260 = vmatpush1.msra.mxu0 0.0
    %261 = vmatprep.subr.mxu0 0.0
    %262 = vmatpush1.msra.mxu0 0.0
    %263 = vmatprep.subr.mxu0 0.0
    %264 = vmatpush1.msra.mxu0 0.0
    %265 = vmatprep.subr.mxu0 0.0
    %266 = vmatpush1.msra.mxu0 0.0
    %267 = vmatprep.subr.mxu0 0.0
    %268 = vmatpush1.msra.mxu0 0.0
    %269 = vmatprep.subr.mxu0 0.0
    %270 = vmatpush1.msra.mxu0 0.0
    %271 = vmatprep.subr.mxu0 0.0
    %272 = vmatpush1.msra.mxu0 0.0
    %273 = vmatprep.subr.mxu0 0.0
    %274 = vmatpush1.msra.mxu0 0.0
    %275 = vmatprep.subr.mxu0 0.0
    %276 = vmatpush1.msra.mxu0 0.0
    %277 = vmatprep.subr.mxu0 0.0
    %278 = vmatpush1.msra.mxu0 0.0
    %279 = vmatprep.subr.mxu0 0.0
    %280 = vmatpush1.msra.mxu0 0.0
    %281 = vmatprep.subr.mxu0 0.0
    %282 = vmatpush1.msra.mxu0 0.0
    %283 = vmatprep.subr.mxu0 0.0
    %284 = vmatpush1.msra.mxu0 0.0
    %285 = vmatprep.subr.mxu0 0.0
    %286 = vmatpush1.msra.mxu0 0.0
    %287 = vmatprep.mubr.f32.mxu0 0.0
    %288 = vmatmul.mubr.f32.gmra.mrb[0].mxu0 %v221
    %v289 = vpop.f32.mrb[0].mxu0
    %v290 = vadd.f32 %v218, %v289
    %v291 = vpop.f32.mrb[0].mxu0
    %v292 = vadd.f32 %v218, %v291
    %293 = vdwg.mxu0
    %v294 = vmax.f32 %v290, 0.0
    %v295 = vmax.f32 %v292, 0.0
    %v296 = vadd.f32 %v46, %v47
    %297 = vadd.xlane.f32.xlu0 %v296
    %v298 = vpop.xlane.xlu0 %297
    %v299 = vadd.f32 %v48, %v49
    %300 = vadd.xlane.f32.xlu0 %v299
    %v301 = vpop.xlane.xlu0 %300
    %v302 = vadd.f32 %v50, %v51
    %303 = vadd.xlane.f32.xlu0 %v302
    %v304 = vpop.xlane.xlu0 %303
    %v305 = vadd.f32 %v52, %v53
    %306 = vadd.xlane.f32.xlu0 %v305
    %v307 = vpop.xlane.xlu0 %306
    %v308 = vrcp.pop 256.0
    %v309 = vmul.f32 %v298, %v308
    %v310 = vmul.f32 %v301, %v308
    %v311 = vmul.f32 %v304, %v308
    %v312 = vmul.f32 %v307, %v308
    %v313 = vld [vmem:[%s4] sm:$0xff]
    %v314 = vld [vmem:[%s4 + $0x8] sm:$0xff]
    %v315 = vld [vmem:[%s5] sm:$0x1]
    %v317 = vlaneseq
    %v318 = vshrl.u32 %v317, 7
    %v319 = vsub.s32 0, %v318
    %v320 = vrot.slane %v315, %v319
    %v326 = vlaneseq
    %v327 = vand.u32 %v326, 127
    %v328 = vlaneseq
    %v329 = vshrl.u32 %v328, 7
    %v330 = vsub.s32 %v327, %v329
    %v331 = vrot.slane %v309, %v330
    %v332 = vadd.s32 %v327, 4294967288
    %v333 = vlaneseq
    %v334 = vshrl.u32 %v333, 7
    %v335 = vsub.s32 %v332, %v334
    %v336 = vrot.slane %v310, %v335
    %vm337 = vcmask 130112
    %v338 = vsel %vm337, %v336, %v331
    %v339 = vlaneseq
    %v340 = vshrl.u32 %v339, 7
    %v341 = vsub.s32 %v327, %v340
    %v342 = vrot.slane %v311, %v341
    %v343 = vlaneseq
    %v344 = vshrl.u32 %v343, 7
    %v345 = vsub.s32 %v332, %v344
    %v346 = vrot.slane %v312, %v345
    %v347 = vsel %vm337, %v346, %v342
    %v348 = vsel %vm125, %v347, %v338
    %vm349 = vcmask 130048
    %v350 = vsel %vm349, %v348, 0
    %352 = vmatprep.subr.mxu0 0.0
    %353 = vmatpush1.msra.mxu0 %v313
    %354 = vmatprep.subr.mxu0 0.0
    %355 = vmatpush1.msra.mxu0 %v314
    %356 = vmatprep.subr.mxu0 0.0
    %357 = vmatpush1.msra.mxu0 0.0
    %358 = vmatprep.subr.mxu0 0.0
    %359 = vmatpush1.msra.mxu0 0.0
    %360 = vmatprep.subr.mxu0 0.0
    %361 = vmatpush1.msra.mxu0 0.0
    %362 = vmatprep.subr.mxu0 0.0
    %363 = vmatpush1.msra.mxu0 0.0
    %364 = vmatprep.subr.mxu0 0.0
    %365 = vmatpush1.msra.mxu0 0.0
    %366 = vmatprep.subr.mxu0 0.0
    %367 = vmatpush1.msra.mxu0 0.0
    %368 = vmatprep.subr.mxu0 0.0
    %369 = vmatpush1.msra.mxu0 0.0
    %370 = vmatprep.subr.mxu0 0.0
    %371 = vmatpush1.msra.mxu0 0.0
    %372 = vmatprep.subr.mxu0 0.0
    %373 = vmatpush1.msra.mxu0 0.0
    %374 = vmatprep.subr.mxu0 0.0
    %375 = vmatpush1.msra.mxu0 0.0
    %376 = vmatprep.subr.mxu0 0.0
    %377 = vmatpush1.msra.mxu0 0.0
    %378 = vmatprep.subr.mxu0 0.0
    %379 = vmatpush1.msra.mxu0 0.0
    %380 = vmatprep.subr.mxu0 0.0
    %381 = vmatpush1.msra.mxu0 0.0
    %382 = vmatprep.subr.mxu0 0.0
    %383 = vmatpush1.msra.mxu0 0.0
    %384 = vmatprep.subr.mxu0 0.0
    %385 = vmatpush1.msra.mxu0 0.0
    %386 = vmatprep.subr.mxu0 0.0
    %387 = vmatpush1.msra.mxu0 0.0
    %388 = vmatprep.subr.mxu0 0.0
    %389 = vmatpush1.msra.mxu0 0.0
    %390 = vmatprep.subr.mxu0 0.0
    %391 = vmatpush1.msra.mxu0 0.0
    %392 = vmatprep.subr.mxu0 0.0
    %393 = vmatpush1.msra.mxu0 0.0
    %394 = vmatprep.subr.mxu0 0.0
    %395 = vmatpush1.msra.mxu0 0.0
    %396 = vmatprep.subr.mxu0 0.0
    %397 = vmatpush1.msra.mxu0 0.0
    %398 = vmatprep.subr.mxu0 0.0
    %399 = vmatpush1.msra.mxu0 0.0
    %400 = vmatprep.subr.mxu0 0.0
    %401 = vmatpush1.msra.mxu0 0.0
    %402 = vmatprep.subr.mxu0 0.0
    %403 = vmatpush1.msra.mxu0 0.0
    %404 = vmatprep.subr.mxu0 0.0
    %405 = vmatpush1.msra.mxu0 0.0
    %406 = vmatprep.subr.mxu0 0.0
    %407 = vmatpush1.msra.mxu0 0.0
    %408 = vmatprep.subr.mxu0 0.0
    %409 = vmatpush1.msra.mxu0 0.0
    %410 = vmatprep.subr.mxu0 0.0
    %411 = vmatpush1.msra.mxu0 0.0
    %412 = vmatprep.subr.mxu0 0.0
    %413 = vmatpush1.msra.mxu0 0.0
    %414 = vmatprep.subr.mxu0 0.0
    %415 = vmatpush1.msra.mxu0 0.0
    %416 = vmatprep.mubr.f32.mxu0 0.0
    %417 = vmatmul.mubr.f32.gmra.mrb[0].mxu0 %v350
    %v418 = vpop.f32.mrb[0].mxu0
    %v419 = vadd.f32 %v320, %v418
    %v420 = vpop.f32.mrb[0].mxu0
    %421 = vdwg.mxu0
    %v422 = vmax.f32 %v419, 0.0
    %v423 = vld [vmem:[%s6] sm:$0xff]
    %v424 = vld [vmem:[%s6 + $0x8] sm:$0xff]
    %v425 = vld [vmem:[%s6 + $0x10] sm:$0xff]
    %v426 = vld [vmem:[%s6 + $0x18] sm:$0xff]
    %v427 = vld [vmem:[%s6 + $0x20] sm:$0xff]
    %v428 = vld [vmem:[%s6 + $0x28] sm:$0xff]
    %v429 = vld [vmem:[%s6 + $0x30] sm:$0xff]
    %v430 = vld [vmem:[%s6 + $0x38] sm:$0xff]
    %v431 = vld [vmem:[%s6 + $0x40] sm:$0xff]
    %v432 = vld [vmem:[%s6 + $0x48] sm:$0xff]
    %v433 = vld [vmem:[%s6 + $0x50] sm:$0xff]
    %v434 = vld [vmem:[%s6 + $0x58] sm:$0xff]
    %v435 = vld [vmem:[%s6 + $0x60] sm:$0xff]
    %v436 = vld [vmem:[%s6 + $0x68] sm:$0xff]
    %v437 = vld [vmem:[%s6 + $0x70] sm:$0xff]
    %v438 = vld [vmem:[%s6 + $0x78] sm:$0xff]
    %v439 = vld [vmem:[%s7] sm:$0x1]
    %v441 = vlaneseq
    %v442 = vshrl.u32 %v441, 7
    %v443 = vsub.s32 0, %v442
    %v444 = vrot.slane %v439, %v443
    %446 = vmatprep.subr.mxu0 0.0
    %447 = vmatpush1.msra.mxu0 %v423
    %448 = vmatprep.subr.mxu0 0.0
    %449 = vmatpush1.msra.mxu0 %v424
    %450 = vmatprep.subr.mxu0 0.0
    %451 = vmatpush1.msra.mxu0 %v425
    %452 = vmatprep.subr.mxu0 0.0
    %453 = vmatpush1.msra.mxu0 %v426
    %454 = vmatprep.subr.mxu0 0.0
    %455 = vmatpush1.msra.mxu0 %v427
    %456 = vmatprep.subr.mxu0 0.0
    %457 = vmatpush1.msra.mxu0 %v428
    %458 = vmatprep.subr.mxu0 0.0
    %459 = vmatpush1.msra.mxu0 %v429
    %460 = vmatprep.subr.mxu0 0.0
    %461 = vmatpush1.msra.mxu0 %v430
    %462 = vmatprep.subr.mxu0 0.0
    %463 = vmatpush1.msra.mxu0 %v431
    %464 = vmatprep.subr.mxu0 0.0
    %465 = vmatpush1.msra.mxu0 %v432
    %466 = vmatprep.subr.mxu0 0.0
    %467 = vmatpush1.msra.mxu0 %v433
    %468 = vmatprep.subr.mxu0 0.0
    %469 = vmatpush1.msra.mxu0 %v434
    %470 = vmatprep.subr.mxu0 0.0
    %471 = vmatpush1.msra.mxu0 %v435
    %472 = vmatprep.subr.mxu0 0.0
    %473 = vmatpush1.msra.mxu0 %v436
    %474 = vmatprep.subr.mxu0 0.0
    %475 = vmatpush1.msra.mxu0 %v437
    %476 = vmatprep.subr.mxu0 0.0
    %477 = vmatpush1.msra.mxu0 %v438
    %478 = vmatprep.subr.mxu0 0.0
    %479 = vmatpush1.msra.mxu0 0.0
    %480 = vmatprep.subr.mxu0 0.0
    %481 = vmatpush1.msra.mxu0 0.0
    %482 = vmatprep.subr.mxu0 0.0
    %483 = vmatpush1.msra.mxu0 0.0
    %484 = vmatprep.subr.mxu0 0.0
    %485 = vmatpush1.msra.mxu0 0.0
    %486 = vmatprep.subr.mxu0 0.0
    %487 = vmatpush1.msra.mxu0 0.0
    %488 = vmatprep.subr.mxu0 0.0
    %489 = vmatpush1.msra.mxu0 0.0
    %490 = vmatprep.subr.mxu0 0.0
    %491 = vmatpush1.msra.mxu0 0.0
    %492 = vmatprep.subr.mxu0 0.0
    %493 = vmatpush1.msra.mxu0 0.0
    %494 = vmatprep.subr.mxu0 0.0
    %495 = vmatpush1.msra.mxu0 0.0
    %496 = vmatprep.subr.mxu0 0.0
    %497 = vmatpush1.msra.mxu0 0.0
    %498 = vmatprep.subr.mxu0 0.0
    %499 = vmatpush1.msra.mxu0 0.0
    %500 = vmatprep.subr.mxu0 0.0
    %501 = vmatpush1.msra.mxu0 0.0
    %502 = vmatprep.subr.mxu0 0.0
    %503 = vmatpush1.msra.mxu0 0.0
    %504 = vmatprep.subr.mxu0 0.0
    %505 = vmatpush1.msra.mxu0 0.0
    %506 = vmatprep.subr.mxu0 0.0
    %507 = vmatpush1.msra.mxu0 0.0
    %508 = vmatprep.subr.mxu0 0.0
    %509 = vmatpush1.msra.mxu0 0.0
    %510 = vmatprep.mubr.f32.mxu0 0.0
    %511 = vmatmul.mubr.f32.gmra.mrb[0].mxu0 %v422
    %v512 = vpop.f32.mrb[0].mxu0
    %v513 = vadd.f32 %v444, %v512
    %v514 = vpop.f32.mrb[0].mxu0
    %515 = vdwg.mxu0
    %v516 = vmax.f32 %v513, 0.0
    %v517 = vld [vmem:[%s8] sm:$0xff]
    %v518 = vld [vmem:[%s8 + $0x8] sm:$0xff]
    %v520 = vsel %vm349, %v516, 0
    %522 = vmatprep.subr.mxu0 0.0
    %523 = vmatpush1.msra.mxu0 %v517
    %524 = vmatprep.subr.mxu0 0.0
    %525 = vmatpush1.msra.mxu0 %v518
    %526 = vmatprep.subr.mxu0 0.0
    %527 = vmatpush1.msra.mxu0 0.0
    %528 = vmatprep.subr.mxu0 0.0
    %529 = vmatpush1.msra.mxu0 0.0
    %530 = vmatprep.subr.mxu0 0.0
    %531 = vmatpush1.msra.mxu0 0.0
    %532 = vmatprep.subr.mxu0 0.0
    %533 = vmatpush1.msra.mxu0 0.0
    %534 = vmatprep.subr.mxu0 0.0
    %535 = vmatpush1.msra.mxu0 0.0
    %536 = vmatprep.subr.mxu0 0.0
    %537 = vmatpush1.msra.mxu0 0.0
    %538 = vmatprep.subr.mxu0 0.0
    %539 = vmatpush1.msra.mxu0 0.0
    %540 = vmatprep.subr.mxu0 0.0
    %541 = vmatpush1.msra.mxu0 0.0
    %542 = vmatprep.subr.mxu0 0.0
    %543 = vmatpush1.msra.mxu0 0.0
    %544 = vmatprep.subr.mxu0 0.0
    %545 = vmatpush1.msra.mxu0 0.0
    %546 = vmatprep.subr.mxu0 0.0
    %547 = vmatpush1.msra.mxu0 0.0
    %548 = vmatprep.subr.mxu0 0.0
    %549 = vmatpush1.msra.mxu0 0.0
    %550 = vmatprep.subr.mxu0 0.0
    %551 = vmatpush1.msra.mxu0 0.0
    %552 = vmatprep.subr.mxu0 0.0
    %553 = vmatpush1.msra.mxu0 0.0
    %554 = vmatprep.subr.mxu0 0.0
    %555 = vmatpush1.msra.mxu0 0.0
    %556 = vmatprep.subr.mxu0 0.0
    %557 = vmatpush1.msra.mxu0 0.0
    %558 = vmatprep.subr.mxu0 0.0
    %559 = vmatpush1.msra.mxu0 0.0
    %560 = vmatprep.subr.mxu0 0.0
    %561 = vmatpush1.msra.mxu0 0.0
    %562 = vmatprep.subr.mxu0 0.0
    %563 = vmatpush1.msra.mxu0 0.0
    %564 = vmatprep.subr.mxu0 0.0
    %565 = vmatpush1.msra.mxu0 0.0
    %566 = vmatprep.subr.mxu0 0.0
    %567 = vmatpush1.msra.mxu0 0.0
    %568 = vmatprep.subr.mxu0 0.0
    %569 = vmatpush1.msra.mxu0 0.0
    %570 = vmatprep.subr.mxu0 0.0
    %571 = vmatpush1.msra.mxu0 0.0
    %572 = vmatprep.subr.mxu0 0.0
    %573 = vmatpush1.msra.mxu0 0.0
    %574 = vmatprep.subr.mxu0 0.0
    %575 = vmatpush1.msra.mxu0 0.0
    %576 = vmatprep.subr.mxu0 0.0
    %577 = vmatpush1.msra.mxu0 0.0
    %578 = vmatprep.subr.mxu0 0.0
    %579 = vmatpush1.msra.mxu0 0.0
    %580 = vmatprep.subr.mxu0 0.0
    %581 = vmatpush1.msra.mxu0 0.0
    %582 = vmatprep.subr.mxu0 0.0
    %583 = vmatpush1.msra.mxu0 0.0
    %584 = vmatprep.subr.mxu0 0.0
    %585 = vmatpush1.msra.mxu0 0.0
    %586 = vmatprep.mubr.f32.mxu0 0.0
    %587 = vmatmul.mubr.f32.gmra.mrb[0].mxu0 %v520
    %v588 = vpop.f32.mrb[0].mxu0
    %v589 = vadd.f32 0.0, %v588
    %v590 = vpop.f32.mrb[0].mxu0
    %591 = vdwg.mxu0
    %593 = vset.pattern.permute.xlu0 0
    %594 = vperm.xlu0 %593, %v589
    %v595 = vpop.permute.xlu0 %594
    %v597 = vmul.f32 %v294, %v595
    %v598 = vmul.f32 %v295, %v595
    %s599 = sld [smem:[#allocation2 + $0x2]]
    %v600 = vstv %s599
    %v601 = vadd.f32 %v597, %v600
    %v602 = vadd.f32 %v598, %v600
    %v603 = vmax.f32 %v601, 0.0
    %v604 = vmax.f32 %v602, 0.0
    %v605 = vxor.u32 %v603, 2147483648
    %v606 = vxor.u32 %v604, 2147483648
    %v607 = vmul.f32 %v605, 1.442695
    %v608 = vpow.pop %v607
    %v609 = vmul.f32 %v606, 1.442695
    %v610 = vpow.pop %v609
    %v611 = vadd.f32 %v608, 1.0
    %v612 = vadd.f32 %v610, 1.0
    %v613 = vrcp.pop %v611
    %v614 = vmul.f32 1.0, %v613
    %v615 = vrcp.pop %v612
    %v616 = vmul.f32 1.0, %v615
    %v619 = vcombine.low %v614, %v616
    %v621 = vunpack.c.l.s4 1966171168
    %v622 = vunpack.c.0.s8 %v621
    %v623 = vlaneseq
    %v624 = vshrl.u32 %v623, 7
    %v625 = vsub.s32 %v622, %v624
    %v626 = vrot.slane %v619, %v625
    %v627 = vcombine.high %v626, %v626
    %v629 = vunpack.c.l.s4 1966171168
    %v630 = vunpack.c.0.s8 %v629
    %v631 = vlaneseq
    %v632 = vshrl.u32 %v631, 7
    %v633 = vsub.s32 %v630, %v632
    %v634 = vrot.slane %v626, %v633
    %v636 = vunpack.c.l.s4 1966171168
    %v637 = vunpack.c.0.s8 %v636
    %v638 = vlaneseq
    %v639 = vshrl.u32 %v638, 7
    %v640 = vsub.s32 %v637, %v639
    %v641 = vrot.slane %v627, %v640
    %v644 = vlaneseq
    %vm645 = vcmp.ge.s32.totalorder %v644, 0
    %vm646 = vcmp.lt.s32.totalorder %v644, 256
    %vm647 = vmand %vm645, %vm646
    %648 = vst.msk [vmem:[#allocation5] ss:$8 sm:$0x3] %vm647, %v634
    %649 = vst.msk [vmem:[#allocation5] ss:$8 sm:$0x0] %vm647, %v634
    %s650 = scalar_lea.vmem [#allocation5], 32
    %651 = vst.msk [vmem:[%s650] ss:$8 sm:$0x3] %vm647, %v641
    %652 = vst.msk [vmem:[%s650] ss:$8 sm:$0x0] %vm647, %v641
    %653 = vset.pattern.permute.xlu0 1
    %654 = vperm.xlu0 %653, %v589
    %v655 = vpop.permute.xlu0 %654
    %v657 = vmul.f32 %v294, %v655
    %v658 = vmul.f32 %v295, %v655
    %s659 = sld [smem:[#allocation2 + $0x3]]
    %v660 = vstv %s659
    %v661 = vadd.f32 %v657, %v660
    %v662 = vadd.f32 %v658, %v660
    %v663 = vmax.f32 %v661, 0.0
    %v664 = vmax.f32 %v662, 0.0
    %v665 = vxor.u32 %v663, 2147483648
    %v666 = vxor.u32 %v664, 2147483648
    %v667 = vmul.f32 %v665, 1.442695
    %v668 = vpow.pop %v667
    %v669 = vmul.f32 %v666, 1.442695
    %v670 = vpow.pop %v669
    %v671 = vadd.f32 %v668, 1.0
    %v672 = vadd.f32 %v670, 1.0
    %v673 = vrcp.pop %v671
    %v674 = vmul.f32 1.0, %v673
    %v675 = vrcp.pop %v672
    %v676 = vmul.f32 1.0, %v675
    %v679 = vcombine.low %v674, %v676
    %v681 = vunpack.c.l.s4 1966171168
    %v682 = vunpack.c.0.s8 %v681
    %v683 = vlaneseq
    %v684 = vshrl.u32 %v683, 7
    %v685 = vsub.s32 %v682, %v684
    %v686 = vrot.slane %v679, %v685
    %v687 = vcombine.high %v686, %v686
    %v689 = vunpack.c.l.s4 1966171168
    %v690 = vunpack.c.0.s8 %v689
    %v691 = vlaneseq
    %v692 = vshrl.u32 %v691, 7
    %v693 = vsub.s32 %v690, %v692
    %v694 = vrot.slane %v686, %v693
    %v696 = vunpack.c.l.s4 1966171168
    %v697 = vunpack.c.0.s8 %v696
    %v698 = vlaneseq
    %v699 = vshrl.u32 %v698, 7
    %v700 = vsub.s32 %v697, %v699
    %v701 = vrot.slane %v687, %v700
    %s704 = scalar_lea.vmem [#allocation5], 1
    %705 = vst.msk [vmem:[%s704] ss:$8 sm:$0x3] %vm647, %v694
    %706 = vst.msk [vmem:[%s704] ss:$8 sm:$0x0] %vm647, %v694
    %s707 = scalar_lea.vmem [#allocation5], 33
    %708 = vst.msk [vmem:[%s707] ss:$8 sm:$0x3] %vm647, %v701
    %709 = vst.msk [vmem:[%s707] ss:$8 sm:$0x0] %vm647, %v701
    %710 = vset.pattern.permute.xlu0 2
    %711 = vperm.xlu0 %710, %v589
    %v712 = vpop.permute.xlu0 %711
    %v714 = vmul.f32 %v294, %v712
    %v715 = vmul.f32 %v295, %v712
    %s716 = sld [smem:[#allocation2 + $0x4]]
    %v717 = vstv %s716
    %v718 = vadd.f32 %v714, %v717
    %v719 = vadd.f32 %v715, %v717
    %v720 = vmax.f32 %v718, 0.0
    %v721 = vmax.f32 %v719, 0.0
    %v722 = vxor.u32 %v720, 2147483648
    %v723 = vxor.u32 %v721, 2147483648
    %v724 = vmul.f32 %v722, 1.442695
    %v725 = vpow.pop %v724
    %v726 = vmul.f32 %v723, 1.442695
    %v727 = vpow.pop %v726
    %v728 = vadd.f32 %v725, 1.0
    %v729 = vadd.f32 %v727, 1.0
    %v730 = vrcp.pop %v728
    %v731 = vmul.f32 1.0, %v730
    %v732 = vrcp.pop %v729
    %v733 = vmul.f32 1.0, %v732
    %v736 = vcombine.low %v731, %v733
    %v738 = vunpack.c.l.s4 1966171168
    %v739 = vunpack.c.0.s8 %v738
    %v740 = vlaneseq
    %v741 = vshrl.u32 %v740, 7
    %v742 = vsub.s32 %v739, %v741
    %v743 = vrot.slane %v736, %v742
    %v744 = vcombine.high %v743, %v743
    %v746 = vunpack.c.l.s4 1966171168
    %v747 = vunpack.c.0.s8 %v746
    %v748 = vlaneseq
    %v749 = vshrl.u32 %v748, 7
    %v750 = vsub.s32 %v747, %v749
    %v751 = vrot.slane %v743, %v750
    %v753 = vunpack.c.l.s4 1966171168
    %v754 = vunpack.c.0.s8 %v753
    %v755 = vlaneseq
    %v756 = vshrl.u32 %v755, 7
    %v757 = vsub.s32 %v754, %v756
    %v758 = vrot.slane %v744, %v757
    %s761 = scalar_lea.vmem [#allocation5], 2
    %762 = vst.msk [vmem:[%s761] ss:$8 sm:$0x3] %vm647, %v751
    %763 = vst.msk [vmem:[%s761] ss:$8 sm:$0x0] %vm647, %v751
    %s764 = scalar_lea.vmem [#allocation5], 34
    %765 = vst.msk [vmem:[%s764] ss:$8 sm:$0x3] %vm647, %v758
    %766 = vst.msk [vmem:[%s764] ss:$8 sm:$0x0] %vm647, %v758
    %767 = vset.pattern.permute.xlu0 3
    %768 = vperm.xlu0 %767, %v589
    %v769 = vpop.permute.xlu0 %768
    %v771 = vmul.f32 %v294, %v769
    %v772 = vmul.f32 %v295, %v769
    %s773 = sld [smem:[#allocation2 + $0x5]]
    %v774 = vstv %s773
    %v775 = vadd.f32 %v771, %v774
    %v776 = vadd.f32 %v772, %v774
    %v777 = vmax.f32 %v775, 0.0
    %v778 = vmax.f32 %v776, 0.0
    %v779 = vxor.u32 %v777, 2147483648
    %v780 = vxor.u32 %v778, 2147483648
    %v781 = vmul.f32 %v779, 1.442695
    %v782 = vpow.pop %v781
    %v783 = vmul.f32 %v780, 1.442695
    %v784 = vpow.pop %v783
    %v785 = vadd.f32 %v782, 1.0
    %v786 = vadd.f32 %v784, 1.0
    %v787 = vrcp.pop %v785
    %v788 = vmul.f32 1.0, %v787
    %v789 = vrcp.pop %v786
    %v790 = vmul.f32 1.0, %v789
    %v793 = vcombine.low %v788, %v790
    %v795 = vunpack.c.l.s4 1966171168
    %v796 = vunpack.c.0.s8 %v795
    %v797 = vlaneseq
    %v798 = vshrl.u32 %v797, 7
    %v799 = vsub.s32 %v796, %v798
    %v800 = vrot.slane %v793, %v799
    %v801 = vcombine.high %v800, %v800
    %v803 = vunpack.c.l.s4 1966171168
    %v804 = vunpack.c.0.s8 %v803
    %v805 = vlaneseq
    %v806 = vshrl.u32 %v805, 7
    %v807 = vsub.s32 %v804, %v806
    %v808 = vrot.slane %v800, %v807
    %v810 = vunpack.c.l.s4 1966171168
    %v811 = vunpack.c.0.s8 %v810
    %v812 = vlaneseq
    %v813 = vshrl.u32 %v812, 7
    %v814 = vsub.s32 %v811, %v813
    %v815 = vrot.slane %v801, %v814
    %s818 = scalar_lea.vmem [#allocation5], 3
    %819 = vst.msk [vmem:[%s818] ss:$8 sm:$0x3] %vm647, %v808
    %820 = vst.msk [vmem:[%s818] ss:$8 sm:$0x0] %vm647, %v808
    %s821 = scalar_lea.vmem [#allocation5], 35
    %822 = vst.msk [vmem:[%s821] ss:$8 sm:$0x3] %vm647, %v815
    %823 = vst.msk [vmem:[%s821] ss:$8 sm:$0x0] %vm647, %v815
    %824 = vset.pattern.permute.xlu0 4
    %825 = vperm.xlu0 %824, %v589
    %v826 = vpop.permute.xlu0 %825
    %v828 = vmul.f32 %v294, %v826
    %v829 = vmul.f32 %v295, %v826
    %s830 = sld [smem:[#allocation2 + $0x6]]
    %v831 = vstv %s830
    %v832 = vadd.f32 %v828, %v831
    %v833 = vadd.f32 %v829, %v831
    %v834 = vmax.f32 %v832, 0.0
    %v835 = vmax.f32 %v833, 0.0
    %v836 = vxor.u32 %v834, 2147483648
    %v837 = vxor.u32 %v835, 2147483648
    %v838 = vmul.f32 %v836, 1.442695
    %v839 = vpow.pop %v838
    %v840 = vmul.f32 %v837, 1.442695
    %v841 = vpow.pop %v840
    %v842 = vadd.f32 %v839, 1.0
    %v843 = vadd.f32 %v841, 1.0
    %v844 = vrcp.pop %v842
    %v845 = vmul.f32 1.0, %v844
    %v846 = vrcp.pop %v843
    %v847 = vmul.f32 1.0, %v846
    %v850 = vcombine.low %v845, %v847
    %v852 = vunpack.c.l.s4 1966171168
    %v853 = vunpack.c.0.s8 %v852
    %v854 = vlaneseq
    %v855 = vshrl.u32 %v854, 7
    %v856 = vsub.s32 %v853, %v855
    %v857 = vrot.slane %v850, %v856
    %v858 = vcombine.high %v857, %v857
    %v860 = vunpack.c.l.s4 1966171168
    %v861 = vunpack.c.0.s8 %v860
    %v862 = vlaneseq
    %v863 = vshrl.u32 %v862, 7
    %v864 = vsub.s32 %v861, %v863
    %v865 = vrot.slane %v857, %v864
    %v867 = vunpack.c.l.s4 1966171168
    %v868 = vunpack.c.0.s8 %v867
    %v869 = vlaneseq
    %v870 = vshrl.u32 %v869, 7
    %v871 = vsub.s32 %v868, %v870
    %v872 = vrot.slane %v858, %v871
    %s875 = scalar_lea.vmem [#allocation5], 4
    %876 = vst.msk [vmem:[%s875] ss:$8 sm:$0x3] %vm647, %v865
    %877 = vst.msk [vmem:[%s875] ss:$8 sm:$0x0] %vm647, %v865
    %s878 = scalar_lea.vmem [#allocation5], 36
    %879 = vst.msk [vmem:[%s878] ss:$8 sm:$0x3] %vm647, %v872
    %880 = vst.msk [vmem:[%s878] ss:$8 sm:$0x0] %vm647, %v872
    %881 = vset.pattern.permute.xlu0 5
    %882 = vperm.xlu0 %881, %v589
    %v883 = vpop.permute.xlu0 %882
    %v885 = vmul.f32 %v294, %v883
    %v886 = vmul.f32 %v295, %v883
    %s887 = sld [smem:[#allocation2 + $0x7]]
    %v888 = vstv %s887
    %v889 = vadd.f32 %v885, %v888
    %v890 = vadd.f32 %v886, %v888
    %v891 = vmax.f32 %v889, 0.0
    %v892 = vmax.f32 %v890, 0.0
    %v893 = vxor.u32 %v891, 2147483648
    %v894 = vxor.u32 %v892, 2147483648
    %v895 = vmul.f32 %v893, 1.442695
    %v896 = vpow.pop %v895
    %v897 = vmul.f32 %v894, 1.442695
    %v898 = vpow.pop %v897
    %v899 = vadd.f32 %v896, 1.0
    %v900 = vadd.f32 %v898, 1.0
    %v901 = vrcp.pop %v899
    %v902 = vmul.f32 1.0, %v901
    %v903 = vrcp.pop %v900
    %v904 = vmul.f32 1.0, %v903
    %v907 = vcombine.low %v902, %v904
    %v909 = vunpack.c.l.s4 1966171168
    %v910 = vunpack.c.0.s8 %v909
    %v911 = vlaneseq
    %v912 = vshrl.u32 %v911, 7
    %v913 = vsub.s32 %v910, %v912
    %v914 = vrot.slane %v907, %v913
    %v915 = vcombine.high %v914, %v914
    %v917 = vunpack.c.l.s4 1966171168
    %v918 = vunpack.c.0.s8 %v917
    %v919 = vlaneseq
    %v920 = vshrl.u32 %v919, 7
    %v921 = vsub.s32 %v918, %v920
    %v922 = vrot.slane %v914, %v921
    %v924 = vunpack.c.l.s4 1966171168
    %v925 = vunpack.c.0.s8 %v924
    %v926 = vlaneseq
    %v927 = vshrl.u32 %v926, 7
    %v928 = vsub.s32 %v925, %v927
    %v929 = vrot.slane %v915, %v928
    %s932 = scalar_lea.vmem [#allocation5], 5
    %933 = vst.msk [vmem:[%s932] ss:$8 sm:$0x3] %vm647, %v922
    %934 = vst.msk [vmem:[%s932] ss:$8 sm:$0x0] %vm647, %v922
    %s935 = scalar_lea.vmem [#allocation5], 37
    %936 = vst.msk [vmem:[%s935] ss:$8 sm:$0x3] %vm647, %v929
    %937 = vst.msk [vmem:[%s935] ss:$8 sm:$0x0] %vm647, %v929
    %938 = vset.pattern.permute.xlu0 6
    %939 = vperm.xlu0 %938, %v589
    %v940 = vpop.permute.xlu0 %939
    %v942 = vmul.f32 %v294, %v940
    %v943 = vmul.f32 %v295, %v940
    %s944 = sld [smem:[#allocation2 + $0x8]]
    %v945 = vstv %s944
    %v946 = vadd.f32 %v942, %v945
    %v947 = vadd.f32 %v943, %v945
    %v948 = vmax.f32 %v946, 0.0
    %v949 = vmax.f32 %v947, 0.0
    %v950 = vxor.u32 %v948, 2147483648
    %v951 = vxor.u32 %v949, 2147483648
    %v952 = vmul.f32 %v950, 1.442695
    %v953 = vpow.pop %v952
    %v954 = vmul.f32 %v951, 1.442695
    %v955 = vpow.pop %v954
    %v956 = vadd.f32 %v953, 1.0
    %v957 = vadd.f32 %v955, 1.0
    %v958 = vrcp.pop %v956
    %v959 = vmul.f32 1.0, %v958
    %v960 = vrcp.pop %v957
    %v961 = vmul.f32 1.0, %v960
    %v964 = vcombine.low %v959, %v961
    %v966 = vunpack.c.l.s4 1966171168
    %v967 = vunpack.c.0.s8 %v966
    %v968 = vlaneseq
    %v969 = vshrl.u32 %v968, 7
    %v970 = vsub.s32 %v967, %v969
    %v971 = vrot.slane %v964, %v970
    %v972 = vcombine.high %v971, %v971
    %v974 = vunpack.c.l.s4 1966171168
    %v975 = vunpack.c.0.s8 %v974
    %v976 = vlaneseq
    %v977 = vshrl.u32 %v976, 7
    %v978 = vsub.s32 %v975, %v977
    %v979 = vrot.slane %v971, %v978
    %v981 = vunpack.c.l.s4 1966171168
    %v982 = vunpack.c.0.s8 %v981
    %v983 = vlaneseq
    %v984 = vshrl.u32 %v983, 7
    %v985 = vsub.s32 %v982, %v984
    %v986 = vrot.slane %v972, %v985
    %s989 = scalar_lea.vmem [#allocation5], 6
    %990 = vst.msk [vmem:[%s989] ss:$8 sm:$0x3] %vm647, %v979
    %991 = vst.msk [vmem:[%s989] ss:$8 sm:$0x0] %vm647, %v979
    %s992 = scalar_lea.vmem [#allocation5], 38
    %993 = vst.msk [vmem:[%s992] ss:$8 sm:$0x3] %vm647, %v986
    %994 = vst.msk [vmem:[%s992] ss:$8 sm:$0x0] %vm647, %v986
    %995 = vset.pattern.permute.xlu0 7
    %996 = vperm.xlu0 %995, %v589
    %v997 = vpop.permute.xlu0 %996
    %v999 = vmul.f32 %v294, %v997
    %v1000 = vmul.f32 %v295, %v997
    %s1001 = sld [smem:[#allocation2 + $0x9]]
    %v1002 = vstv %s1001
    %v1003 = vadd.f32 %v999, %v1002
    %v1004 = vadd.f32 %v1000, %v1002
    %v1005 = vmax.f32 %v1003, 0.0
    %v1006 = vmax.f32 %v1004, 0.0
    %v1007 = vxor.u32 %v1005, 2147483648
    %v1008 = vxor.u32 %v1006, 2147483648
    %v1009 = vmul.f32 %v1007, 1.442695
    %v1010 = vpow.pop %v1009
    %v1011 = vmul.f32 %v1008, 1.442695
    %v1012 = vpow.pop %v1011
    %v1013 = vadd.f32 %v1010, 1.0
    %v1014 = vadd.f32 %v1012, 1.0
    %v1015 = vrcp.pop %v1013
    %v1016 = vmul.f32 1.0, %v1015
    %v1017 = vrcp.pop %v1014
    %v1018 = vmul.f32 1.0, %v1017
    %v1021 = vcombine.low %v1016, %v1018
    %v1023 = vunpack.c.l.s4 1966171168
    %v1024 = vunpack.c.0.s8 %v1023
    %v1025 = vlaneseq
    %v1026 = vshrl.u32 %v1025, 7
    %v1027 = vsub.s32 %v1024, %v1026
    %v1028 = vrot.slane %v1021, %v1027
    %v1029 = vcombine.high %v1028, %v1028
    %v1031 = vunpack.c.l.s4 1966171168
    %v1032 = vunpack.c.0.s8 %v1031
    %v1033 = vlaneseq
    %v1034 = vshrl.u32 %v1033, 7
    %v1035 = vsub.s32 %v1032, %v1034
    %v1036 = vrot.slane %v1028, %v1035
    %v1038 = vunpack.c.l.s4 1966171168
    %v1039 = vunpack.c.0.s8 %v1038
    %v1040 = vlaneseq
    %v1041 = vshrl.u32 %v1040, 7
    %v1042 = vsub.s32 %v1039, %v1041
    %v1043 = vrot.slane %v1029, %v1042
    %s1046 = scalar_lea.vmem [#allocation5], 7
    %1047 = vst.msk [vmem:[%s1046] ss:$8 sm:$0x3] %vm647, %v1036
    %1048 = vst.msk [vmem:[%s1046] ss:$8 sm:$0x0] %vm647, %v1036
    %s1049 = scalar_lea.vmem [#allocation5], 39
    %1050 = vst.msk [vmem:[%s1049] ss:$8 sm:$0x3] %vm647, %v1043
    %1051 = vst.msk [vmem:[%s1049] ss:$8 sm:$0x0] %vm647, %v1043
    %1052 = vset.pattern.permute.xlu0 8
    %1053 = vperm.xlu0 %1052, %v589
    %v1054 = vpop.permute.xlu0 %1053
    %v1056 = vmul.f32 %v294, %v1054
    %v1057 = vmul.f32 %v295, %v1054
    %s1058 = sld [smem:[#allocation2 + $0xa]]
    %v1059 = vstv %s1058
    %v1060 = vadd.f32 %v1056, %v1059
    %v1061 = vadd.f32 %v1057, %v1059
    %v1062 = vmax.f32 %v1060, 0.0
    %v1063 = vmax.f32 %v1061, 0.0
    %v1064 = vxor.u32 %v1062, 2147483648
    %v1065 = vxor.u32 %v1063, 2147483648
    %v1066 = vmul.f32 %v1064, 1.442695
    %v1067 = vpow.pop %v1066
    %v1068 = vmul.f32 %v1065, 1.442695
    %v1069 = vpow.pop %v1068
    %v1070 = vadd.f32 %v1067, 1.0
    %v1071 = vadd.f32 %v1069, 1.0
    %v1072 = vrcp.pop %v1070
    %v1073 = vmul.f32 1.0, %v1072
    %v1074 = vrcp.pop %v1071
    %v1075 = vmul.f32 1.0, %v1074
    %v1078 = vcombine.low %v1073, %v1075
    %v1080 = vunpack.c.l.s4 1966171168
    %v1081 = vunpack.c.0.s8 %v1080
    %v1082 = vlaneseq
    %v1083 = vshrl.u32 %v1082, 7
    %v1084 = vsub.s32 %v1081, %v1083
    %v1085 = vrot.slane %v1078, %v1084
    %v1086 = vcombine.high %v1085, %v1085
    %v1088 = vunpack.c.l.s4 1966171168
    %v1089 = vunpack.c.0.s8 %v1088
    %v1090 = vlaneseq
    %v1091 = vshrl.u32 %v1090, 7
    %v1092 = vsub.s32 %v1089, %v1091
    %v1093 = vrot.slane %v1085, %v1092
    %v1095 = vunpack.c.l.s4 1966171168
    %v1096 = vunpack.c.0.s8 %v1095
    %v1097 = vlaneseq
    %v1098 = vshrl.u32 %v1097, 7
    %v1099 = vsub.s32 %v1096, %v1098
    %v1100 = vrot.slane %v1086, %v1099
    %s1103 = scalar_lea.vmem [#allocation5], 16
    %1104 = vst.msk [vmem:[%s1103] ss:$8 sm:$0x3] %vm647, %v1093
    %1105 = vst.msk [vmem:[%s1103] ss:$8 sm:$0x0] %vm647, %v1093
    %s1106 = scalar_lea.vmem [#allocation5], 48
    %1107 = vst.msk [vmem:[%s1106] ss:$8 sm:$0x3] %vm647, %v1100
    %1108 = vst.msk [vmem:[%s1106] ss:$8 sm:$0x0] %vm647, %v1100
    %1109 = vset.pattern.permute.xlu0 9
    %1110 = vperm.xlu0 %1109, %v589
    %v1111 = vpop.permute.xlu0 %1110
    %v1113 = vmul.f32 %v294, %v1111
    %v1114 = vmul.f32 %v295, %v1111
    %s1115 = sld [smem:[#allocation2 + $0xb]]
    %v1116 = vstv %s1115
    %v1117 = vadd.f32 %v1113, %v1116
    %v1118 = vadd.f32 %v1114, %v1116
    %v1119 = vmax.f32 %v1117, 0.0
    %v1120 = vmax.f32 %v1118, 0.0
    %v1121 = vxor.u32 %v1119, 2147483648
    %v1122 = vxor.u32 %v1120, 2147483648
    %v1123 = vmul.f32 %v1121, 1.442695
    %v1124 = vpow.pop %v1123
    %v1125 = vmul.f32 %v1122, 1.442695
    %v1126 = vpow.pop %v1125
    %v1127 = vadd.f32 %v1124, 1.0
    %v1128 = vadd.f32 %v1126, 1.0
    %v1129 = vrcp.pop %v1127
    %v1130 = vmul.f32 1.0, %v1129
    %v1131 = vrcp.pop %v1128
    %v1132 = vmul.f32 1.0, %v1131
    %v1135 = vcombine.low %v1130, %v1132
    %v1137 = vunpack.c.l.s4 1966171168
    %v1138 = vunpack.c.0.s8 %v1137
    %v1139 = vlaneseq
    %v1140 = vshrl.u32 %v1139, 7
    %v1141 = vsub.s32 %v1138, %v1140
    %v1142 = vrot.slane %v1135, %v1141
    %v1143 = vcombine.high %v1142, %v1142
    %v1145 = vunpack.c.l.s4 1966171168
    %v1146 = vunpack.c.0.s8 %v1145
    %v1147 = vlaneseq
    %v1148 = vshrl.u32 %v1147, 7
    %v1149 = vsub.s32 %v1146, %v1148
    %v1150 = vrot.slane %v1142, %v1149
    %v1152 = vunpack.c.l.s4 1966171168
    %v1153 = vunpack.c.0.s8 %v1152
    %v1154 = vlaneseq
    %v1155 = vshrl.u32 %v1154, 7
    %v1156 = vsub.s32 %v1153, %v1155
    %v1157 = vrot.slane %v1143, %v1156
    %s1160 = scalar_lea.vmem [#allocation5], 17
    %1161 = vst.msk [vmem:[%s1160] ss:$8 sm:$0x3] %vm647, %v1150
    %1162 = vst.msk [vmem:[%s1160] ss:$8 sm:$0x0] %vm647, %v1150
    %s1163 = scalar_lea.vmem [#allocation5], 49
    %1164 = vst.msk [vmem:[%s1163] ss:$8 sm:$0x3] %vm647, %v1157
    %1165 = vst.msk [vmem:[%s1163] ss:$8 sm:$0x0] %vm647, %v1157
    %1166 = vset.pattern.permute.xlu0 10
    %1167 = vperm.xlu0 %1166, %v589
    %v1168 = vpop.permute.xlu0 %1167
    %v1170 = vmul.f32 %v294, %v1168
    %v1171 = vmul.f32 %v295, %v1168
    %s1172 = sld [smem:[#allocation2 + $0xc]]
    %v1173 = vstv %s1172
    %v1174 = vadd.f32 %v1170, %v1173
    %v1175 = vadd.f32 %v1171, %v1173
    %v1176 = vmax.f32 %v1174, 0.0
    %v1177 = vmax.f32 %v1175, 0.0
    %v1178 = vxor.u32 %v1176, 2147483648
    %v1179 = vxor.u32 %v1177, 2147483648
    %v1180 = vmul.f32 %v1178, 1.442695
    %v1181 = vpow.pop %v1180
    %v1182 = vmul.f32 %v1179, 1.442695
    %v1183 = vpow.pop %v1182
    %v1184 = vadd.f32 %v1181, 1.0
    %v1185 = vadd.f32 %v1183, 1.0
    %v1186 = vrcp.pop %v1184
    %v1187 = vmul.f32 1.0, %v1186
    %v1188 = vrcp.pop %v1185
    %v1189 = vmul.f32 1.0, %v1188
    %v1192 = vcombine.low %v1187, %v1189
    %v1194 = vunpack.c.l.s4 1966171168
    %v1195 = vunpack.c.0.s8 %v1194
    %v1196 = vlaneseq
    %v1197 = vshrl.u32 %v1196, 7
    %v1198 = vsub.s32 %v1195, %v1197
    %v1199 = vrot.slane %v1192, %v1198
    %v1200 = vcombine.high %v1199, %v1199
    %v1202 = vunpack.c.l.s4 1966171168
    %v1203 = vunpack.c.0.s8 %v1202
    %v1204 = vlaneseq
    %v1205 = vshrl.u32 %v1204, 7
    %v1206 = vsub.s32 %v1203, %v1205
    %v1207 = vrot.slane %v1199, %v1206
    %v1209 = vunpack.c.l.s4 1966171168
    %v1210 = vunpack.c.0.s8 %v1209
    %v1211 = vlaneseq
    %v1212 = vshrl.u32 %v1211, 7
    %v1213 = vsub.s32 %v1210, %v1212
    %v1214 = vrot.slane %v1200, %v1213
    %s1217 = scalar_lea.vmem [#allocation5], 18
    %1218 = vst.msk [vmem:[%s1217] ss:$8 sm:$0x3] %vm647, %v1207
    %1219 = vst.msk [vmem:[%s1217] ss:$8 sm:$0x0] %vm647, %v1207
    %s1220 = scalar_lea.vmem [#allocation5], 50
    %1221 = vst.msk [vmem:[%s1220] ss:$8 sm:$0x3] %vm647, %v1214
    %1222 = vst.msk [vmem:[%s1220] ss:$8 sm:$0x0] %vm647, %v1214
    %1223 = vset.pattern.permute.xlu0 11
    %1224 = vperm.xlu0 %1223, %v589
    %v1225 = vpop.permute.xlu0 %1224
    %v1227 = vmul.f32 %v294, %v1225
    %v1228 = vmul.f32 %v295, %v1225
    %s1229 = sld [smem:[#allocation2 + $0xd]]
    %v1230 = vstv %s1229
    %v1231 = vadd.f32 %v1227, %v1230
    %v1232 = vadd.f32 %v1228, %v1230
    %v1233 = vmax.f32 %v1231, 0.0
    %v1234 = vmax.f32 %v1232, 0.0
    %v1235 = vxor.u32 %v1233, 2147483648
    %v1236 = vxor.u32 %v1234, 2147483648
    %v1237 = vmul.f32 %v1235, 1.442695
    %v1238 = vpow.pop %v1237
    %v1239 = vmul.f32 %v1236, 1.442695
    %v1240 = vpow.pop %v1239
    %v1241 = vadd.f32 %v1238, 1.0
    %v1242 = vadd.f32 %v1240, 1.0
    %v1243 = vrcp.pop %v1241
    %v1244 = vmul.f32 1.0, %v1243
    %v1245 = vrcp.pop %v1242
    %v1246 = vmul.f32 1.0, %v1245
    %v1249 = vcombine.low %v1244, %v1246
    %v1251 = vunpack.c.l.s4 1966171168
    %v1252 = vunpack.c.0.s8 %v1251
    %v1253 = vlaneseq
    %v1254 = vshrl.u32 %v1253, 7
    %v1255 = vsub.s32 %v1252, %v1254
    %v1256 = vrot.slane %v1249, %v1255
    %v1257 = vcombine.high %v1256, %v1256
    %v1259 = vunpack.c.l.s4 1966171168
    %v1260 = vunpack.c.0.s8 %v1259
    %v1261 = vlaneseq
    %v1262 = vshrl.u32 %v1261, 7
    %v1263 = vsub.s32 %v1260, %v1262
    %v1264 = vrot.slane %v1256, %v1263
    %v1266 = vunpack.c.l.s4 1966171168
    %v1267 = vunpack.c.0.s8 %v1266
    %v1268 = vlaneseq
    %v1269 = vshrl.u32 %v1268, 7
    %v1270 = vsub.s32 %v1267, %v1269
    %v1271 = vrot.slane %v1257, %v1270
    %s1274 = scalar_lea.vmem [#allocation5], 19
    %1275 = vst.msk [vmem:[%s1274] ss:$8 sm:$0x3] %vm647, %v1264
    %1276 = vst.msk [vmem:[%s1274] ss:$8 sm:$0x0] %vm647, %v1264
    %s1277 = scalar_lea.vmem [#allocation5], 51
    %1278 = vst.msk [vmem:[%s1277] ss:$8 sm:$0x3] %vm647, %v1271
    %1279 = vst.msk [vmem:[%s1277] ss:$8 sm:$0x0] %vm647, %v1271
    %1280 = vset.pattern.permute.xlu0 12
    %1281 = vperm.xlu0 %1280, %v589
    %v1282 = vpop.permute.xlu0 %1281
    %v1284 = vmul.f32 %v294, %v1282
    %v1285 = vmul.f32 %v295, %v1282
    %s1286 = sld [smem:[#allocation2 + $0xe]]
    %v1287 = vstv %s1286
    %v1288 = vadd.f32 %v1284, %v1287
    %v1289 = vadd.f32 %v1285, %v1287
    %v1290 = vmax.f32 %v1288, 0.0
    %v1291 = vmax.f32 %v1289, 0.0
    %v1292 = vxor.u32 %v1290, 2147483648
    %v1293 = vxor.u32 %v1291, 2147483648
    %v1294 = vmul.f32 %v1292, 1.442695
    %v1295 = vpow.pop %v1294
    %v1296 = vmul.f32 %v1293, 1.442695
    %v1297 = vpow.pop %v1296
    %v1298 = vadd.f32 %v1295, 1.0
    %v1299 = vadd.f32 %v1297, 1.0
    %v1300 = vrcp.pop %v1298
    %v1301 = vmul.f32 1.0, %v1300
    %v1302 = vrcp.pop %v1299
    %v1303 = vmul.f32 1.0, %v1302
    %v1306 = vcombine.low %v1301, %v1303
    %v1308 = vunpack.c.l.s4 1966171168
    %v1309 = vunpack.c.0.s8 %v1308
    %v1310 = vlaneseq
    %v1311 = vshrl.u32 %v1310, 7
    %v1312 = vsub.s32 %v1309, %v1311
    %v1313 = vrot.slane %v1306, %v1312
    %v1314 = vcombine.high %v1313, %v1313
    %v1316 = vunpack.c.l.s4 1966171168
    %v1317 = vunpack.c.0.s8 %v1316
    %v1318 = vlaneseq
    %v1319 = vshrl.u32 %v1318, 7
    %v1320 = vsub.s32 %v1317, %v1319
    %v1321 = vrot.slane %v1313, %v1320
    %v1323 = vunpack.c.l.s4 1966171168
    %v1324 = vunpack.c.0.s8 %v1323
    %v1325 = vlaneseq
    %v1326 = vshrl.u32 %v1325, 7
    %v1327 = vsub.s32 %v1324, %v1326
    %v1328 = vrot.slane %v1314, %v1327
    %s1331 = scalar_lea.vmem [#allocation5], 20
    %1332 = vst.msk [vmem:[%s1331] ss:$8 sm:$0x3] %vm647, %v1321
    %1333 = vst.msk [vmem:[%s1331] ss:$8 sm:$0x0] %vm647, %v1321
    %s1334 = scalar_lea.vmem [#allocation5], 52
    %1335 = vst.msk [vmem:[%s1334] ss:$8 sm:$0x3] %vm647, %v1328
    %1336 = vst.msk [vmem:[%s1334] ss:$8 sm:$0x0] %vm647, %v1328
    %1337 = vset.pattern.permute.xlu0 13
    %1338 = vperm.xlu0 %1337, %v589
    %v1339 = vpop.permute.xlu0 %1338
    %v1341 = vmul.f32 %v294, %v1339
    %v1342 = vmul.f32 %v295, %v1339
    %s1343 = sld [smem:[#allocation2 + $0xf]]
    %v1344 = vstv %s1343
    %v1345 = vadd.f32 %v1341, %v1344
    %v1346 = vadd.f32 %v1342, %v1344
    %v1347 = vmax.f32 %v1345, 0.0
    %v1348 = vmax.f32 %v1346, 0.0
    %v1349 = vxor.u32 %v1347, 2147483648
    %v1350 = vxor.u32 %v1348, 2147483648
    %v1351 = vmul.f32 %v1349, 1.442695
    %v1352 = vpow.pop %v1351
    %v1353 = vmul.f32 %v1350, 1.442695
    %v1354 = vpow.pop %v1353
    %v1355 = vadd.f32 %v1352, 1.0
    %v1356 = vadd.f32 %v1354, 1.0
    %v1357 = vrcp.pop %v1355
    %v1358 = vmul.f32 1.0, %v1357
    %v1359 = vrcp.pop %v1356
    %v1360 = vmul.f32 1.0, %v1359
    %v1363 = vcombine.low %v1358, %v1360
    %v1365 = vunpack.c.l.s4 1966171168
    %v1366 = vunpack.c.0.s8 %v1365
    %v1367 = vlaneseq
    %v1368 = vshrl.u32 %v1367, 7
    %v1369 = vsub.s32 %v1366, %v1368
    %v1370 = vrot.slane %v1363, %v1369
    %v1371 = vcombine.high %v1370, %v1370
    %v1373 = vunpack.c.l.s4 1966171168
    %v1374 = vunpack.c.0.s8 %v1373
    %v1375 = vlaneseq
    %v1376 = vshrl.u32 %v1375, 7
    %v1377 = vsub.s32 %v1374, %v1376
    %v1378 = vrot.slane %v1370, %v1377
    %v1380 = vunpack.c.l.s4 1966171168
    %v1381 = vunpack.c.0.s8 %v1380
    %v1382 = vlaneseq
    %v1383 = vshrl.u32 %v1382, 7
    %v1384 = vsub.s32 %v1381, %v1383
    %v1385 = vrot.slane %v1371, %v1384
    %s1388 = scalar_lea.vmem [#allocation5], 21
    %1389 = vst.msk [vmem:[%s1388] ss:$8 sm:$0x3] %vm647, %v1378
    %1390 = vst.msk [vmem:[%s1388] ss:$8 sm:$0x0] %vm647, %v1378
    %s1391 = scalar_lea.vmem [#allocation5], 53
    %1392 = vst.msk [vmem:[%s1391] ss:$8 sm:$0x3] %vm647, %v1385
    %1393 = vst.msk [vmem:[%s1391] ss:$8 sm:$0x0] %vm647, %v1385
    %1394 = vset.pattern.permute.xlu0 14
    %1395 = vperm.xlu0 %1394, %v589
    %v1396 = vpop.permute.xlu0 %1395
    %v1398 = vmul.f32 %v294, %v1396
    %v1399 = vmul.f32 %v295, %v1396
    %s1400 = sld [smem:[#allocation2 + $0x10]]
    %v1401 = vstv %s1400
    %v1402 = vadd.f32 %v1398, %v1401
    %v1403 = vadd.f32 %v1399, %v1401
    %v1404 = vmax.f32 %v1402, 0.0
    %v1405 = vmax.f32 %v1403, 0.0
    %v1406 = vxor.u32 %v1404, 2147483648
    %v1407 = vxor.u32 %v1405, 2147483648
    %v1408 = vmul.f32 %v1406, 1.442695
    %v1409 = vpow.pop %v1408
    %v1410 = vmul.f32 %v1407, 1.442695
    %v1411 = vpow.pop %v1410
    %v1412 = vadd.f32 %v1409, 1.0
    %v1413 = vadd.f32 %v1411, 1.0
    %v1414 = vrcp.pop %v1412
    %v1415 = vmul.f32 1.0, %v1414
    %v1416 = vrcp.pop %v1413
    %v1417 = vmul.f32 1.0, %v1416
    %v1420 = vcombine.low %v1415, %v1417
    %v1422 = vunpack.c.l.s4 1966171168
    %v1423 = vunpack.c.0.s8 %v1422
    %v1424 = vlaneseq
    %v1425 = vshrl.u32 %v1424, 7
    %v1426 = vsub.s32 %v1423, %v1425
    %v1427 = vrot.slane %v1420, %v1426
    %v1428 = vcombine.high %v1427, %v1427
    %v1430 = vunpack.c.l.s4 1966171168
    %v1431 = vunpack.c.0.s8 %v1430
    %v1432 = vlaneseq
    %v1433 = vshrl.u32 %v1432, 7
    %v1434 = vsub.s32 %v1431, %v1433
    %v1435 = vrot.slane %v1427, %v1434
    %v1437 = vunpack.c.l.s4 1966171168
    %v1438 = vunpack.c.0.s8 %v1437
    %v1439 = vlaneseq
    %v1440 = vshrl.u32 %v1439, 7
    %v1441 = vsub.s32 %v1438, %v1440
    %v1442 = vrot.slane %v1428, %v1441
    %s1445 = scalar_lea.vmem [#allocation5], 22
    %1446 = vst.msk [vmem:[%s1445] ss:$8 sm:$0x3] %vm647, %v1435
    %1447 = vst.msk [vmem:[%s1445] ss:$8 sm:$0x0] %vm647, %v1435
    %s1448 = scalar_lea.vmem [#allocation5], 54
    %1449 = vst.msk [vmem:[%s1448] ss:$8 sm:$0x3] %vm647, %v1442
    %1450 = vst.msk [vmem:[%s1448] ss:$8 sm:$0x0] %vm647, %v1442
    %1451 = vset.pattern.permute.xlu0 15
    %1452 = vperm.xlu0 %1451, %v589
    %v1453 = vpop.permute.xlu0 %1452
    %v1455 = vmul.f32 %v294, %v1453
    %v1456 = vmul.f32 %v295, %v1453
    %s1457 = sld [smem:[#allocation2 + $0x11]]
    %v1458 = vstv %s1457
    %v1459 = vadd.f32 %v1455, %v1458
    %v1460 = vadd.f32 %v1456, %v1458
    %v1461 = vmax.f32 %v1459, 0.0
    %v1462 = vmax.f32 %v1460, 0.0
    %v1463 = vxor.u32 %v1461, 2147483648
    %v1464 = vxor.u32 %v1462, 2147483648
    %v1465 = vmul.f32 %v1463, 1.442695
    %v1466 = vpow.pop %v1465
    %v1467 = vmul.f32 %v1464, 1.442695
    %v1468 = vpow.pop %v1467
    %v1469 = vadd.f32 %v1466, 1.0
    %v1470 = vadd.f32 %v1468, 1.0
    %v1471 = vrcp.pop %v1469
    %v1472 = vmul.f32 1.0, %v1471
    %v1473 = vrcp.pop %v1470
    %v1474 = vmul.f32 1.0, %v1473
    %v1477 = vcombine.low %v1472, %v1474
    %v1479 = vunpack.c.l.s4 1966171168
    %v1480 = vunpack.c.0.s8 %v1479
    %v1481 = vlaneseq
    %v1482 = vshrl.u32 %v1481, 7
    %v1483 = vsub.s32 %v1480, %v1482
    %v1484 = vrot.slane %v1477, %v1483
    %v1485 = vcombine.high %v1484, %v1484
    %v1487 = vunpack.c.l.s4 1966171168
    %v1488 = vunpack.c.0.s8 %v1487
    %v1489 = vlaneseq
    %v1490 = vshrl.u32 %v1489, 7
    %v1491 = vsub.s32 %v1488, %v1490
    %v1492 = vrot.slane %v1484, %v1491
    %v1494 = vunpack.c.l.s4 1966171168
    %v1495 = vunpack.c.0.s8 %v1494
    %v1496 = vlaneseq
    %v1497 = vshrl.u32 %v1496, 7
    %v1498 = vsub.s32 %v1495, %v1497
    %v1499 = vrot.slane %v1485, %v1498
    %s1502 = scalar_lea.vmem [#allocation5], 23
    %1503 = vst.msk [vmem:[%s1502] ss:$8 sm:$0x3] %vm647, %v1492
    %1504 = vst.msk [vmem:[%s1502] ss:$8 sm:$0x0] %vm647, %v1492
    %s1505 = scalar_lea.vmem [#allocation5], 55
    %1506 = vst.msk [vmem:[%s1505] ss:$8 sm:$0x3] %vm647, %v1499
    %1507 = vst.msk [vmem:[%s1505] ss:$8 sm:$0x0] %vm647, %v1499
    // Predicated region
    $region42: #{tpu_custom_call.1} parent=1 // pred_check
      _
    $region43: #{tpu_custom_call.1} parent=1 // pred_check_branch
      %1509 = sbr.rel (0) target = $region45
    $region44: #{tpu_custom_call.1} parent=1 // pred_region
      %s1511 = ssub.s32 1024, 1024
      %1512 = vsyncadd [#allocation3], %s1511
      %s1513 = sshll.u32 [#allocation5], 4
      %s1514 = int_to_ptr.vmem [resolvable:$true] %s1513
      %1519 = dma.vmem_to_hbm [thread:$0]  %s1514, 1024, %s9, [#allocation3], 256, 256, 16
    $region45: #{tpu_custom_call.1} parent=1 // pred_fallthru
      _
    // Predicated region
    $region46: #{tpu_custom_call.1} parent=1 // pred_check
      _
    $region47: #{tpu_custom_call.1} parent=1 // pred_check_branch
      %1521 = sbr.rel (0) target = $region49
    $region48: #{tpu_custom_call.1} parent=1 // pred_region
      %1522 = dma.done [#allocation3], 1024
    $region49: #{tpu_custom_call.1} parent=1 // pred_fallthru
      _
    %1523 = vsyncpa [#allocation3], 1
    %1524 = vsyncpa [#allocation4], 1

</llo_original>
